<compile_context>
chip_gen: v6e
topology: v6e:2x2x1
jax: 0.10.0
libtpu: 0.0.40
codegen_flags: <defaults>
</compile_context>

<pallas_src>
import functools
import math

import jax
import jax.numpy as jnp
from jax.experimental import pallas as pl
from jax.experimental.pallas import tpu as pltpu


def _round_up(x, m):
    return (x + m - 1) // m * m


def _vmem_limit_bytes():
    """~3/4 of physical VMEM, capped at 100 MiB (safe on v5e/v6e/v7x)."""
    cap = None
    try:
        cap = getattr(pltpu.get_tpu_info(), "vmem_capacity_bytes", None)
    except Exception:
        cap = None
    if not cap:
        cap = 64 * 1024 * 1024  # conservative fallback (v7x per-TC VMEM)
    return min(int(cap * 3 // 4), 100 * 1024 * 1024)


# ---------------------------------------------------------------------------
# Fused path (small graphs): whole forward in one gridless, VMEM-resident call.
#     out = relu(A @ (relu(A @ (relu(x w0 + b0) w1) + b1) w2) + b2) wh + bh
# ---------------------------------------------------------------------------
def fused_gnn_kernel(x_ref, a_ref, w0_ref, b0_ref, w1_ref, b1_ref,
                     w2_ref, b2_ref, wh_ref, bh_ref, o_ref):
    bf = jnp.bfloat16
    # pre_mp: Linear + ReLU, fused with layer-1 feature transform.
    h = jnp.dot(x_ref[...], w0_ref[...], preferred_element_type=jnp.float32)
    h = jnp.maximum(h + b0_ref[...], 0.0)
    z1 = jnp.dot(h.astype(bf), w1_ref[...],
                 preferred_element_type=jnp.float32).astype(bf)
    # MP layer 1.
    h = jnp.dot(a_ref[...], z1, preferred_element_type=jnp.float32)
    h = jnp.maximum(h + b1_ref[...], 0.0)
    z2 = jnp.dot(h.astype(bf), w2_ref[...],
                 preferred_element_type=jnp.float32).astype(bf)
    # MP layer 2 + node head.
    h = jnp.dot(a_ref[...], z2, preferred_element_type=jnp.float32)
    h = jnp.maximum(h + b2_ref[...], 0.0)
    out = jnp.dot(h.astype(bf), wh_ref[...],
                  preferred_element_type=jnp.float32) + bh_ref[...]
    o_ref[...] = out.astype(o_ref.dtype)


def fused_gnn_call(x, a, w0, b0, w1, b1, w2, b2, wh, bh, *, vmem_limit):
    n, f_in = x.shape
    d = w0.shape[1]
    d_out = wh.shape[1]
    cost = pl.CostEstimate(
        flops=2 * n * (f_in * d + 2 * d * d + d * d_out + 2 * n * d),
        transcendentals=0,
        bytes_accessed=(a.size * 2 + x.size * 2
                        + (w0.size + w1.size + w2.size + wh.size) * 2
                        + (b0.size + b1.size + b2.size + bh.size) * 4
                        + n * d_out * 4),
    )
    return pl.pallas_call(
        fused_gnn_kernel,
        out_shape=jax.ShapeDtypeStruct((n, d_out), jnp.float32),
        compiler_params=pltpu.CompilerParams(vmem_limit_bytes=vmem_limit),
        cost_estimate=cost,
    )(x, a, w0, b0, w1, b1, w2, b2, wh, bh)


# ---------------------------------------------------------------------------
# Tiled path, kernel 1: pre-MP Linear+ReLU fused with layer-1 feature
# transform:  z1 = relu(x @ w0 + b0) @ w1.   Row-gridded, weights resident.
# ---------------------------------------------------------------------------
def pre_mp_kernel(x_ref, w0_ref, b0_ref, w1_ref, o_ref):
    h = jnp.dot(x_ref[...], w0_ref[...], preferred_element_type=jnp.float32)
    h = jnp.maximum(h + b0_ref[...], 0.0)
    z = jnp.dot(h.astype(jnp.bfloat16), w1_ref[...],
                preferred_element_type=jnp.float32)
    o_ref[...] = z.astype(o_ref.dtype)


def pre_mp_call(x, w0, b0, w1, *, tm, vmem_limit):
    n, f_in = x.shape
    d = w0.shape[1]
    d_next = w1.shape[1]
    cost = pl.CostEstimate(
        flops=2 * n * (f_in * d + d * d_next),
        transcendentals=0,
        bytes_accessed=(x.size * 2 + w0.size * 2 + w1.size * 2
                        + b0.size * 4 + n * d_next * 2),
    )
    return pl.pallas_call(
        pre_mp_kernel,
        out_shape=jax.ShapeDtypeStruct((n, d_next), jnp.bfloat16),
        grid=(n // tm,),
        in_specs=[
            pl.BlockSpec((tm, f_in), lambda i: (i, 0)),      # x rows (f_in unpadded)
            pl.BlockSpec((f_in, d), lambda i: (0, 0)),       # w0 (resident)
            pl.BlockSpec((1, d), lambda i: (0, 0)),          # b0 (resident)
            pl.BlockSpec((d, d_next), lambda i: (0, 0)),     # w1 (resident)
        ],
        out_specs=pl.BlockSpec((tm, d_next), lambda i: (i, 0)),
        compiler_params=pltpu.CompilerParams(
            dimension_semantics=("parallel",),
            vmem_limit_bytes=vmem_limit,
        ),
        cost_estimate=cost,
    )(x, w0, b0, w1)


# ---------------------------------------------------------------------------
# Tiled path, kernel 2: one message-passing layer fused with the following
# feature transform (or the node head):
#     out = relu(A_norm @ z + b) @ w_next + b_next
# Grid = (row blocks [parallel], contraction blocks [arbitrary]); A streamed
# in (tm, tk) tiles, z resident (sliced with pl.ds), f32 VMEM accumulator.
# ---------------------------------------------------------------------------
def mp_layer_kernel(a_ref, z_ref, b_ref, wn_ref, bn_ref, o_ref, acc_ref,
                    *, tk, z_resident):
    k = pl.program_id(1)

    @pl.when(k == 0)
    def _():
        acc_ref[...] = jnp.zeros_like(acc_ref)

    if z_resident:
        start = pl.multiple_of(k * tk, tk)
        z_tile = z_ref[pl.ds(start, tk), :]
    else:
        z_tile = z_ref[...]
    acc_ref[...] += jnp.dot(a_ref[...], z_tile,
                            preferred_element_type=jnp.float32)

    @pl.when(k == pl.num_programs(1) - 1)
    def _():
        h = jnp.maximum(acc_ref[...] + b_ref[...], 0.0)
        out = jnp.dot(h.astype(jnp.bfloat16), wn_ref[...],
                      preferred_element_type=jnp.float32) + bn_ref[...]
        o_ref[...] = out.astype(o_ref.dtype)


def mp_layer_call(a, z, b, w_next, b_next, *, tm, tk, out_dtype, vmem_limit,
                  z_resident=True):
    n = a.shape[0]
    d = z.shape[1]
    d_next = w_next.shape[1]
    out_bytes = jnp.dtype(out_dtype).itemsize
    z_traffic = z.size * 2 if z_resident else (n // tm) * z.size * 2
    cost = pl.CostEstimate(
        flops=2 * n * n * d + 2 * n * d * d_next,
        transcendentals=0,
        bytes_accessed=(a.size * 2 + z_traffic + w_next.size * 2
                        + b.size * 4 + b_next.size * 4 + n * d_next * out_bytes),
    )
    if z_resident:
        z_spec = pl.BlockSpec((n, d), lambda i, k: (0, 0))      # DMA'd once
    else:
        z_spec = pl.BlockSpec((tk, d), lambda i, k: (k, 0))     # streamed
    kernel = functools.partial(mp_layer_kernel, tk=tk, z_resident=z_resident)
    return pl.pallas_call(
        kernel,
        out_shape=jax.ShapeDtypeStruct((n, d_next), out_dtype),
        grid=(n // tm, n // tk),
        in_specs=[
            pl.BlockSpec((tm, tk), lambda i, k: (i, k)),        # A tile (streamed)
            z_spec,
            pl.BlockSpec((1, d), lambda i, k: (0, 0)),          # layer bias (resident)
            pl.BlockSpec((d, d_next), lambda i, k: (0, 0)),     # next weight (resident)
            pl.BlockSpec((1, d_next), lambda i, k: (0, 0)),     # next bias (resident)
        ],
        out_specs=pl.BlockSpec((tm, d_next), lambda i, k: (i, 0)),
        scratch_shapes=[pltpu.VMEM((tm, d), jnp.float32)],
        compiler_params=pltpu.CompilerParams(
            dimension_semantics=("parallel", "arbitrary"),
            vmem_limit_bytes=vmem_limit,
        ),
        cost_estimate=cost,
    )(a, z, b, w_next, b_next)


# ---------------------------------------------------------------------------
# Wrapper: picks fused vs tiled path, pads to lane-dense shapes, casts to
# bf16, slices padding back off.
#
# Padding invariant: padded graph nodes have all-zero A_norm columns/rows and
# the result is sliced to [:n, :dim_out], so the (non-zero, relu(bias)-driven)
# padded z rows never contaminate real outputs; padded wh columns / bh entries
# are zero so extra output lanes are sliced off exactly.
# ---------------------------------------------------------------------------
def gnn_forward(x, a_norm, params, *, tm=256, tk=512, tm_pre=512,
                force_path=None):
    (w0, b0, w1, b1, w2, b2, wh, bh) = params
    n, dim_in = x.shape
    dim_inner = w0.shape[1]
    dim_out = wh.shape[1]
    bf = jnp.bfloat16
    vmem_limit = _vmem_limit_bytes()

    d_out_p = _round_up(dim_out, 128)
    wh_p = jnp.zeros((dim_inner, d_out_p), bf).at[:, :dim_out].set(wh.astype(bf))
    bh_p = jnp.zeros((1, d_out_p), jnp.float32).at[:, :dim_out].set(bh)
    zero_b = jnp.zeros((1, dim_inner), jnp.float32)

    # Fused-path working-set estimate (gridless => single buffers; ~3 live
    # (n, d) f32 intermediates at peak).
    n_f = _round_up(n, 8)
    fused_bytes = (2 * n_f * n_f + 2 * n_f * dim_in + 12 * n_f * dim_inner
                   + 4 * n_f * d_out_p
                   + 4 * dim_inner * (dim_in + 3 * dim_inner + d_out_p))
    use_fused = fused_bytes <= vmem_limit // 2
    if force_path == "fused":
        use_fused = True
    elif force_path == "tiled":
        use_fused = False

    if use_fused:
        x_p = jnp.zeros((n_f, dim_in), bf).at[:n, :].set(x.astype(bf))
        a_p = jnp.zeros((n_f, n_f), bf).at[:n, :n].set(a_norm.astype(bf))
        out = fused_gnn_call(x_p, a_p, w0.astype(bf), b0, w1.astype(bf), b1,
                             w2.astype(bf), b2, wh_p, bh_p,
                             vmem_limit=vmem_limit)
        return out[:n, :dim_out]

    # ---- tiled / streamed-A path (large graphs) ----
    n_p = _round_up(n, math.lcm(tm, tk, tm_pre))
    x_p = jnp.zeros((n_p, dim_in), bf).at[:n, :].set(x.astype(bf))
    a_p = jnp.zeros((n_p, n_p), bf).at[:n, :n].set(a_norm.astype(bf))
    # z resident iff 2 pipeline buffers of (n_p, d) bf16 fit the budget.
    z_resident = 2 * (2 * n_p * dim_inner) <= vmem_limit // 2

    # pre_mp (Linear+ReLU) fused with layer-1 transform: z1 = relu(x w0 + b0) w1
    z1 = pre_mp_call(x_p, w0.astype(bf), b0, w1.astype(bf),
                     tm=tm_pre, vmem_limit=vmem_limit)
    # MP layer 1 (A streamed once, z1 resident): z2 = relu(A z1 + b1) w2
    z2 = mp_layer_call(a_p, z1, b1, w2.astype(bf), zero_b,
                       tm=tm, tk=tk, out_dtype=bf, vmem_limit=vmem_limit,
                       z_resident=z_resident)
    # MP layer 2 fused with node head: out = relu(A z2 + b2) wh + bh
    out = mp_layer_call(a_p, z2, b2, wh_p, bh_p,
                        tm=tm, tk=tk, out_dtype=jnp.float32,
                        vmem_limit=vmem_limit, z_resident=z_resident)
    return out[:n, :dim_out]


# ---------------------------------------------------------------------------
# Reference (matches the kernel's bf16-input / f32-accumulate numerics).
# ---------------------------------------------------------------------------
def reference_forward(x, a_norm, params):
    (w0, b0, w1, b1, w2, b2, wh, bh) = params
    bf = jnp.bfloat16
    xb, ab = x.astype(bf), a_norm.astype(bf)
    w0b, w1b, w2b, whb = (w.astype(bf) for w in (w0, w1, w2, wh))

    def mm(a, b):
        return jnp.dot(a, b, preferred_element_type=jnp.float32)

    h = jnp.maximum(mm(xb, w0b) + b0, 0.0)
    z1 = mm(h.astype(bf), w1b).astype(bf)
    h = jnp.maximum(mm(ab, z1) + b1, 0.0)
    z2 = mm(h.astype(bf), w2b).astype(bf)
    h = jnp.maximum(mm(ab, z2) + b2, 0.0)
    return mm(h.astype(bf), whb) + bh


def make_params(key, dim_in, dim_inner, dim_out):
    ks = jax.random.split(key, 8)

    def glorot(k, fan_in, fan_out):
        lim = jnp.sqrt(6.0 / (fan_in + fan_out))
        return jax.random.uniform(k, (fan_in, fan_out), jnp.float32, -lim, lim)

    w0 = glorot(ks[0], dim_in, dim_inner)
    w1 = glorot(ks[1], dim_inner, dim_inner)
    w2 = glorot(ks[2], dim_inner, dim_inner)
    wh = glorot(ks[3], dim_inner, dim_out)
    b0 = jax.random.uniform(ks[4], (1, dim_inner), jnp.float32, -0.1, 0.1)
    b1 = jax.random.uniform(ks[5], (1, dim_inner), jnp.float32, -0.1, 0.1)
    b2 = jax.random.uniform(ks[6], (1, dim_inner), jnp.float32, -0.1, 0.1)
    bh = jax.random.uniform(ks[7], (1, dim_out), jnp.float32, -0.1, 0.1)
    return (w0, b0, w1, b1, w2, b2, wh, bh)


def make_norm_adjacency(n):
    # Deterministic ring graph with self loops, symmetric-normalized (GCN).
    idx = jnp.arange(n)
    adj = jnp.zeros((n, n), jnp.float32)
    adj = adj.at[idx, (idx + 1) % n].set(1.0)
    adj = adj.at[(idx + 1) % n, idx].set(1.0)
    adj = adj + jnp.eye(n, dtype=jnp.float32)
    deg = adj.sum(axis=1)
    d_inv_sqrt = 1.0 / jnp.sqrt(deg)
    return adj * d_inv_sqrt[:, None] * d_inv_sqrt[None, :]


if __name__ == "__main__":
    DIM_IN, DIM_INNER, DIM_OUT = 16, 128, 8

    # Case 1: small graph -> fused single-call path.
    N = 256
    kx, kp = jax.random.split(jax.random.PRNGKey(0))
    x = jax.random.normal(kx, (N, DIM_IN), jnp.float32)
    a_norm = make_norm_adjacency(N)
    params = make_params(kp, DIM_IN, DIM_INNER, DIM_OUT)

    out = jax.block_until_ready(gnn_forward(x, a_norm, params))
    ref = reference_forward(x, a_norm, params)
    assert out.shape == (N, DIM_OUT)
    assert jnp.allclose(out, ref, atol=2e-2, rtol=2e-2), float(
        jnp.max(jnp.abs(out - ref)))

    # Case 2: force the tiled / streamed-A path (what large graphs take),
    # with smaller tiles so the grid has several row and contraction blocks.
    N2 = 640
    kx2, kp2 = jax.random.split(jax.random.PRNGKey(1))
    x2 = jax.random.normal(kx2, (N2, DIM_IN), jnp.float32)
    a2 = make_norm_adjacency(N2)
    params2 = make_params(kp2, DIM_IN, DIM_INNER, DIM_OUT)

    out2 = jax.block_until_ready(
        gnn_forward(x2, a2, params2, tm=128, tk=256, tm_pre=256,
                    force_path="tiled"))
    ref2 = reference_forward(x2, a2, params2)
    assert out2.shape == (N2, DIM_OUT)
    assert jnp.allclose(out2, ref2, atol=2e-2, rtol=2e-2), float(
        jnp.max(jnp.abs(out2 - ref2)))

    print("KERNEL_OK")
</pallas_src>

<mosaic_0001>
module attributes {stable_mosaic.version = 11 : i64} {
  func.func @fused_gnn_kernel(%arg0: memref<256x16xbf16, #tpu.memory_space<vmem>>, %arg1: memref<256x256xbf16, #tpu.memory_space<vmem>>, %arg2: memref<16x128xbf16, #tpu.memory_space<vmem>>, %arg3: memref<1x128xf32, #tpu.memory_space<vmem>>, %arg4: memref<128x128xbf16, #tpu.memory_space<vmem>>, %arg5: memref<1x128xf32, #tpu.memory_space<vmem>>, %arg6: memref<128x128xbf16, #tpu.memory_space<vmem>>, %arg7: memref<1x128xf32, #tpu.memory_space<vmem>>, %arg8: memref<128x128xbf16, #tpu.memory_space<vmem>>, %arg9: memref<1x128xf32, #tpu.memory_space<vmem>>, %arg10: memref<256x128xf32, #tpu.memory_space<vmem>>) attributes {dimension_semantics = [], scalar_prefetch = 0 : i64, scratch_operands = 0 : i64, tpu.core_type = #tpu.core_type<tc>} {
    %c0 = arith.constant 0 : index
    %c0_0 = arith.constant 0 : index
    %0 = vector.load %arg0[%c0, %c0_0] : memref<256x16xbf16, #tpu.memory_space<vmem>>, vector<256x16xbf16>
    %c0_1 = arith.constant 0 : index
    %c0_2 = arith.constant 0 : index
    %1 = vector.load %arg2[%c0_1, %c0_2] : memref<16x128xbf16, #tpu.memory_space<vmem>>, vector<16x128xbf16>
    %cst = arith.constant dense<0.000000e+00> : vector<256x128xf32>
    %2 = tpu.matmul %0, %1, %cst {dimension_numbers = #tpu.dot_dimension_numbers<[1], [0], [0], [1], [0, 0, 1, 1], [], []>} : vector<256x16xbf16>, vector<16x128xbf16>, vector<256x128xf32> -> vector<256x128xf32>
    %c0_3 = arith.constant 0 : index
    %c0_4 = arith.constant 0 : index
    %3 = vector.load %arg3[%c0_3, %c0_4] : memref<1x128xf32, #tpu.memory_space<vmem>>, vector<1x128xf32>
    %4 = vector.broadcast %3 : vector<1x128xf32> to vector<256x128xf32>
    %5 = arith.addf %2, %4 : vector<256x128xf32>
    %cst_5 = arith.constant 0.000000e+00 : f32
    %6 = vector.broadcast %cst_5 : f32 to vector<256x128xf32>
    %7 = arith.maximumf %5, %6 : vector<256x128xf32>
    %8 = arith.truncf %7 : vector<256x128xf32> to vector<256x128xbf16>
    %c0_6 = arith.constant 0 : index
    %c0_7 = arith.constant 0 : index
    %9 = vector.load %arg4[%c0_6, %c0_7] : memref<128x128xbf16, #tpu.memory_space<vmem>>, vector<128x128xbf16>
    %cst_8 = arith.constant dense<0.000000e+00> : vector<256x128xf32>
    %10 = tpu.matmul %8, %9, %cst_8 {dimension_numbers = #tpu.dot_dimension_numbers<[1], [0], [0], [1], [0, 0, 1, 1], [], []>} : vector<256x128xbf16>, vector<128x128xbf16>, vector<256x128xf32> -> vector<256x128xf32>
    %11 = arith.truncf %10 : vector<256x128xf32> to vector<256x128xbf16>
    %c0_9 = arith.constant 0 : index
    %c0_10 = arith.constant 0 : index
    %12 = vector.load %arg1[%c0_9, %c0_10] : memref<256x256xbf16, #tpu.memory_space<vmem>>, vector<256x256xbf16>
    %cst_11 = arith.constant dense<0.000000e+00> : vector<256x128xf32>
    %13 = tpu.matmul %12, %11, %cst_11 {dimension_numbers = #tpu.dot_dimension_numbers<[1], [0], [0], [1], [0, 0, 1, 1], [], []>} : vector<256x256xbf16>, vector<256x128xbf16>, vector<256x128xf32> -> vector<256x128xf32>
    %c0_12 = arith.constant 0 : index
    %c0_13 = arith.constant 0 : index
    %14 = vector.load %arg5[%c0_12, %c0_13] : memref<1x128xf32, #tpu.memory_space<vmem>>, vector<1x128xf32>
    %15 = vector.broadcast %14 : vector<1x128xf32> to vector<256x128xf32>
    %16 = arith.addf %13, %15 : vector<256x128xf32>
    %cst_14 = arith.constant 0.000000e+00 : f32
    %17 = vector.broadcast %cst_14 : f32 to vector<256x128xf32>
    %18 = arith.maximumf %16, %17 : vector<256x128xf32>
    %19 = arith.truncf %18 : vector<256x128xf32> to vector<256x128xbf16>
    %c0_15 = arith.constant 0 : index
    %c0_16 = arith.constant 0 : index
    %20 = vector.load %arg6[%c0_15, %c0_16] : memref<128x128xbf16, #tpu.memory_space<vmem>>, vector<128x128xbf16>
    %cst_17 = arith.constant dense<0.000000e+00> : vector<256x128xf32>
    %21 = tpu.matmul %19, %20, %cst_17 {dimension_numbers = #tpu.dot_dimension_numbers<[1], [0], [0], [1], [0, 0, 1, 1], [], []>} : vector<256x128xbf16>, vector<128x128xbf16>, vector<256x128xf32> -> vector<256x128xf32>
    %22 = arith.truncf %21 : vector<256x128xf32> to vector<256x128xbf16>
    %c0_18 = arith.constant 0 : index
    %c0_19 = arith.constant 0 : index
    %23 = vector.load %arg1[%c0_18, %c0_19] : memref<256x256xbf16, #tpu.memory_space<vmem>>, vector<256x256xbf16>
    %cst_20 = arith.constant dense<0.000000e+00> : vector<256x128xf32>
    %24 = tpu.matmul %23, %22, %cst_20 {dimension_numbers = #tpu.dot_dimension_numbers<[1], [0], [0], [1], [0, 0, 1, 1], [], []>} : vector<256x256xbf16>, vector<256x128xbf16>, vector<256x128xf32> -> vector<256x128xf32>
    %c0_21 = arith.constant 0 : index
    %c0_22 = arith.constant 0 : index
    %25 = vector.load %arg7[%c0_21, %c0_22] : memref<1x128xf32, #tpu.memory_space<vmem>>, vector<1x128xf32>
    %26 = vector.broadcast %25 : vector<1x128xf32> to vector<256x128xf32>
    %27 = arith.addf %24, %26 : vector<256x128xf32>
    %cst_23 = arith.constant 0.000000e+00 : f32
    %28 = vector.broadcast %cst_23 : f32 to vector<256x128xf32>
    %29 = arith.maximumf %27, %28 : vector<256x128xf32>
    %30 = arith.truncf %29 : vector<256x128xf32> to vector<256x128xbf16>
    %c0_24 = arith.constant 0 : index
    %c0_25 = arith.constant 0 : index
    %31 = vector.load %arg8[%c0_24, %c0_25] : memref<128x128xbf16, #tpu.memory_space<vmem>>, vector<128x128xbf16>
    %cst_26 = arith.constant dense<0.000000e+00> : vector<256x128xf32>
    %32 = tpu.matmul %30, %31, %cst_26 {dimension_numbers = #tpu.dot_dimension_numbers<[1], [0], [0], [1], [0, 0, 1, 1], [], []>} : vector<256x128xbf16>, vector<128x128xbf16>, vector<256x128xf32> -> vector<256x128xf32>
    %c0_27 = arith.constant 0 : index
    %c0_28 = arith.constant 0 : index
    %33 = vector.load %arg9[%c0_27, %c0_28] : memref<1x128xf32, #tpu.memory_space<vmem>>, vector<1x128xf32>
    %34 = vector.broadcast %33 : vector<1x128xf32> to vector<256x128xf32>
    %35 = arith.addf %32, %34 : vector<256x128xf32>
    %c0_29 = arith.constant 0 : index
    %c0_30 = arith.constant 0 : index
    %36 = vector.load %arg10[%c0_29, %c0_30] : memref<256x128xf32, #tpu.memory_space<vmem>>, vector<256x128xf32>
    tpu.vector_store %arg10[%c0_29, %c0_30], %35 {strides = array<i32>} : memref<256x128xf32, #tpu.memory_space<vmem>>, vector<256x128xf32>,
    return
  }
}

</mosaic_0001>

<llo_original>
// kernel: tpu_custom_call.1
$region0: #{tpu_custom_call.1}
  #allocation0 [shape = 'u32[]', space=smem, size = 0x4, offset = 0x4, fixed_abs, tag = 'smem constant byte address 0x4 - core index']
  #allocation1 [shape = 'u32[144,128]{1,0:T(1,128)}', space=vmem, size = 0x12000, scoped, tag = 'internal scratch']
  %s0 = inlined_call_operand.vmem [shape: bf16[256,16], index: 0, kind: input, shape index: {}]
  %s1 = inlined_call_operand.hbm [shape: bf16[256,256], index: 1, kind: input, shape index: {}]
  %s2 = inlined_call_operand.vmem [shape: bf16[16,128], index: 2, kind: input, shape index: {}]
  %s3 = inlined_call_operand.vmem [shape: f32[1,128], index: 3, kind: input, shape index: {}]
  %s4 = inlined_call_operand.vmem [shape: bf16[128,128], index: 4, kind: input, shape index: {}]
  %s5 = inlined_call_operand.vmem [shape: f32[1,128], index: 5, kind: input, shape index: {}]
  %s6 = inlined_call_operand.vmem [shape: bf16[128,128], index: 6, kind: input, shape index: {}]
  %s7 = inlined_call_operand.vmem [shape: f32[1,128], index: 7, kind: input, shape index: {}]
  %s8 = inlined_call_operand.hbm [shape: bf16[128,128], index: 8, kind: input, shape index: {}]
  %s9 = inlined_call_operand.vmem [shape: f32[1,128], index: 9, kind: input, shape index: {}]
  %s10 = inlined_call_operand.hbm [shape: f32[256,128], index: 10, kind: output, shape index: {}]
  %s11 = sld [smem:[#allocation0]]
  $region58: #{tpu_custom_call.1} parent=0
    _
  %s13 = ssub.s32 1, %s11
  %s14 = scalar_select 0, %s13, %s11
  $region1: #{tpu_custom_call.1} parent=0
    #allocation2 [shape = 'u8[131072]{0}', space=vmem, size = 0x20000, scoped, tag = 'input window, operand 1, single buffered']
    #allocation3 [shape = 's32[1]{0}', space=sflag, size = 0x4, scoped, tag = 'scoped memory for tpu_custom_call.1']
    #allocation4 [shape = 's32[1]{0}', space=sflag, size = 0x4, scoped, tag = 'scoped memory for tpu_custom_call.1']
    #allocation5 [shape = 'u8[32768]{0}', space=vmem, size = 0x8000, scoped, tag = 'input window, operand 8, single buffered']
    #allocation6 [shape = 's32[1]{0}', space=sflag, size = 0x4, scoped, tag = 'scoped memory for tpu_custom_call.1']
    #allocation7 [shape = 'u8[131072]{0}', space=vmem, size = 0x20000, scoped, tag = 'output window, operand 0, single buffered']
    %15 = vsyncpa [#allocation3], 0
    %16 = vsyncpa [#allocation6], 0
    %17 = vsyncpa [#allocation4], 0
    // Predicated region
    $region2: #{tpu_custom_call.1} parent=1 // pred_check
      _
    $region3: #{tpu_custom_call.1} parent=1 // pred_check_branch
      %19 = sbr.rel (0) target = $region5
    $region4: #{tpu_custom_call.1} parent=1 // pred_region
      _
    $region5: #{tpu_custom_call.1} parent=1 // pred_fallthru
      _
    // Predicated region
    $region6: #{tpu_custom_call.1} parent=1 // pred_check
      _
    $region7: #{tpu_custom_call.1} parent=1 // pred_check_branch
      %21 = sbr.rel (0) target = $region9
    $region8: #{tpu_custom_call.1} parent=1 // pred_region
      %s23 = ssub.s32 4096, 4096
      %24 = vsyncadd [#allocation3], %s23
      %s25 = sshll.u32 [#allocation2], 4
      %s26 = int_to_ptr.vmem [resolvable:$true] %s25
      %31 = dma.hbm_to_vmem [thread:$0]  %s1, 4096, %s26, [#allocation3], 128, 128, 8
    $region9: #{tpu_custom_call.1} parent=1 // pred_fallthru
      _
    // Predicated region
    $region10: #{tpu_custom_call.1} parent=1 // pred_check
      _
    $region11: #{tpu_custom_call.1} parent=1 // pred_check_branch
      %33 = sbr.rel (0) target = $region13
    $region12: #{tpu_custom_call.1} parent=1 // pred_region
      _
    $region13: #{tpu_custom_call.1} parent=1 // pred_fallthru
      _
    // Predicated region
    $region14: #{tpu_custom_call.1} parent=1 // pred_check
      _
    $region15: #{tpu_custom_call.1} parent=1 // pred_check_branch
      %35 = sbr.rel (0) target = $region17
    $region16: #{tpu_custom_call.1} parent=1 // pred_region
      _
    $region17: #{tpu_custom_call.1} parent=1 // pred_fallthru
      _
    // Predicated region
    $region18: #{tpu_custom_call.1} parent=1 // pred_check
      _
    $region19: #{tpu_custom_call.1} parent=1 // pred_check_branch
      %37 = sbr.rel (0) target = $region21
    $region20: #{tpu_custom_call.1} parent=1 // pred_region
      _
    $region21: #{tpu_custom_call.1} parent=1 // pred_fallthru
      _
    // Predicated region
    $region22: #{tpu_custom_call.1} parent=1 // pred_check
      _
    $region23: #{tpu_custom_call.1} parent=1 // pred_check_branch
      %39 = sbr.rel (0) target = $region25
    $region24: #{tpu_custom_call.1} parent=1 // pred_region
      _
    $region25: #{tpu_custom_call.1} parent=1 // pred_fallthru
      _
    // Predicated region
    $region26: #{tpu_custom_call.1} parent=1 // pred_check
      _
    $region27: #{tpu_custom_call.1} parent=1 // pred_check_branch
      %41 = sbr.rel (0) target = $region29
    $region28: #{tpu_custom_call.1} parent=1 // pred_region
      _
    $region29: #{tpu_custom_call.1} parent=1 // pred_fallthru
      _
    // Predicated region
    $region30: #{tpu_custom_call.1} parent=1 // pred_check
      _
    $region31: #{tpu_custom_call.1} parent=1 // pred_check_branch
      %43 = sbr.rel (0) target = $region33
    $region32: #{tpu_custom_call.1} parent=1 // pred_region
      _
    $region33: #{tpu_custom_call.1} parent=1 // pred_fallthru
      _
    // Predicated region
    $region34: #{tpu_custom_call.1} parent=1 // pred_check
      _
    $region35: #{tpu_custom_call.1} parent=1 // pred_check_branch
      %45 = sbr.rel (0) target = $region37
    $region36: #{tpu_custom_call.1} parent=1 // pred_region
      %s47 = ssub.s32 1024, 1024
      %48 = vsyncadd [#allocation6], %s47
      %s49 = sshll.u32 [#allocation5], 4
      %s50 = int_to_ptr.vmem [resolvable:$true] %s49
      %55 = dma.hbm_to_vmem [thread:$0]  %s8, 1024, %s50, [#allocation6], 64, 64, 4
    $region37: #{tpu_custom_call.1} parent=1 // pred_fallthru
      _
    // Predicated region
    $region38: #{tpu_custom_call.1} parent=1 // pred_check
      _
    $region39: #{tpu_custom_call.1} parent=1 // pred_check_branch
      %57 = sbr.rel (0) target = $region41
    $region40: #{tpu_custom_call.1} parent=1 // pred_region
      _
    $region41: #{tpu_custom_call.1} parent=1 // pred_fallthru
      _
    // Predicated region
    $region42: #{tpu_custom_call.1} parent=1 // pred_check
      _
    $region43: #{tpu_custom_call.1} parent=1 // pred_check_branch
      %59 = sbr.rel (0) target = $region45
    $region44: #{tpu_custom_call.1} parent=1 // pred_region
      %60 = dma.done [#allocation3], 4096
    $region45: #{tpu_custom_call.1} parent=1 // pred_fallthru
      _
    // Predicated region
    $region46: #{tpu_custom_call.1} parent=1 // pred_check
      _
    $region47: #{tpu_custom_call.1} parent=1 // pred_check_branch
      %62 = sbr.rel (0) target = $region49
    $region48: #{tpu_custom_call.1} parent=1 // pred_region
      %63 = dma.done [#allocation6], 1024
    $region49: #{tpu_custom_call.1} parent=1 // pred_fallthru
      _
    %v65 = vld [vmem:[%s0] sm:$0xf]
    %v66 = vld [vmem:[%s0 + $0x4] sm:$0xf]
    %v67 = vld [vmem:[%s0 + $0x8] sm:$0xf]
    %v68 = vld [vmem:[%s0 + $0xc] sm:$0xf]
    %v69 = vld [vmem:[%s0 + $0x10] sm:$0xf]
    %v70 = vld [vmem:[%s0 + $0x14] sm:$0xf]
    %v71 = vld [vmem:[%s0 + $0x18] sm:$0xf]
    %v72 = vld [vmem:[%s0 + $0x1c] sm:$0xf]
    %v73 = vld [vmem:[%s0 + $0x20] sm:$0xf]
    %v74 = vld [vmem:[%s0 + $0x24] sm:$0xf]
    %v75 = vld [vmem:[%s0 + $0x28] sm:$0xf]
    %v76 = vld [vmem:[%s0 + $0x2c] sm:$0xf]
    %v77 = vld [vmem:[%s0 + $0x30] sm:$0xf]
    %v78 = vld [vmem:[%s0 + $0x34] sm:$0xf]
    %v79 = vld [vmem:[%s0 + $0x38] sm:$0xf]
    %v80 = vld [vmem:[%s0 + $0x3c] sm:$0xf]
    %v81 = vld [vmem:[%s0 + $0x40] sm:$0xf]
    %v82 = vld [vmem:[%s0 + $0x44] sm:$0xf]
    %v83 = vld [vmem:[%s0 + $0x48] sm:$0xf]
    %v84 = vld [vmem:[%s0 + $0x4c] sm:$0xf]
    %v85 = vld [vmem:[%s0 + $0x50] sm:$0xf]
    %v86 = vld [vmem:[%s0 + $0x54] sm:$0xf]
    %v87 = vld [vmem:[%s0 + $0x58] sm:$0xf]
    %v88 = vld [vmem:[%s0 + $0x5c] sm:$0xf]
    %v89 = vld [vmem:[%s0 + $0x60] sm:$0xf]
    %v90 = vld [vmem:[%s0 + $0x64] sm:$0xf]
    %v91 = vld [vmem:[%s0 + $0x68] sm:$0xf]
    %v92 = vld [vmem:[%s0 + $0x6c] sm:$0xf]
    %v93 = vld [vmem:[%s0 + $0x70] sm:$0xf]
    %v94 = vld [vmem:[%s0 + $0x74] sm:$0xf]
    %v95 = vld [vmem:[%s0 + $0x78] sm:$0xf]
    %v96 = vld [vmem:[%s0 + $0x7c] sm:$0xf]
    %v97 = vld [vmem:[%s2] sm:$0xf]
    %v98 = vld [vmem:[%s2 + $0x4] sm:$0xf]
    %v99 = vld [vmem:[%s3] sm:$0x1]
    %v101 = vlaneseq
    %v102 = vshrl.u32 %v101, 7
    %v103 = vsub.s32 0, %v102
    %v104 = vrot.slane %v99, %v103
    %v138 = vunpack.c.l.b16 %v65
    %v139 = vunpack.c.l.b16 %v66
    %v140 = vunpack.c.l.b16 %v67
    %v141 = vunpack.c.l.b16 %v68
    %v142 = vunpack.c.l.b16 %v69
    %v143 = vunpack.c.l.b16 %v70
    %v144 = vunpack.c.l.b16 %v71
    %v145 = vunpack.c.l.b16 %v72
    %v146 = vunpack.c.l.b16 %v73
    %v147 = vunpack.c.l.b16 %v74
    %v148 = vunpack.c.l.b16 %v75
    %v149 = vunpack.c.l.b16 %v76
    %v150 = vunpack.c.l.b16 %v77
    %v151 = vunpack.c.l.b16 %v78
    %v152 = vunpack.c.l.b16 %v79
    %v153 = vunpack.c.l.b16 %v80
    %v154 = vunpack.c.l.b16 %v81
    %v155 = vunpack.c.l.b16 %v82
    %v156 = vunpack.c.l.b16 %v83
    %v157 = vunpack.c.l.b16 %v84
    %v158 = vunpack.c.l.b16 %v85
    %v159 = vunpack.c.l.b16 %v86
    %v160 = vunpack.c.l.b16 %v87
    %v161 = vunpack.c.l.b16 %v88
    %v162 = vunpack.c.l.b16 %v89
    %v163 = vunpack.c.l.b16 %v90
    %v164 = vunpack.c.l.b16 %v91
    %v165 = vunpack.c.l.b16 %v92
    %v166 = vunpack.c.l.b16 %v93
    %v167 = vunpack.c.l.b16 %v94
    %v168 = vunpack.c.l.b16 %v95
    %v169 = vunpack.c.l.b16 %v96
    %v170 = vpack.c.b16 %v139, %v138
    %v171 = vpack.c.b16 %v141, %v140
    %v172 = vpack.c.b16 %v143, %v142
    %v173 = vpack.c.b16 %v145, %v144
    %v174 = vpack.c.b16 %v147, %v146
    %v175 = vpack.c.b16 %v149, %v148
    %v176 = vpack.c.b16 %v151, %v150
    %v177 = vpack.c.b16 %v153, %v152
    %v178 = vpack.c.b16 %v155, %v154
    %v179 = vpack.c.b16 %v157, %v156
    %v180 = vpack.c.b16 %v159, %v158
    %v181 = vpack.c.b16 %v161, %v160
    %v182 = vpack.c.b16 %v163, %v162
    %v183 = vpack.c.b16 %v165, %v164
    %v184 = vpack.c.b16 %v167, %v166
    %v185 = vpack.c.b16 %v169, %v168
    %v188 = vunpack.c.l.b16 %v97
    %v189 = vunpack.c.l.b16 %v98
    %v190 = vpack.c.b16 %v189, %v188
    %vm192 = vcmask 130048
    %v194 = vsel %vm192, %v170, 0
    %v197 = vsel %vm192, %v171, 0
    %v200 = vsel %vm192, %v172, 0
    %v203 = vsel %vm192, %v173, 0
    %v206 = vsel %vm192, %v174, 0
    %v209 = vsel %vm192, %v175, 0
    %v212 = vsel %vm192, %v176, 0
    %v215 = vsel %vm192, %v177, 0
    %v218 = vsel %vm192, %v178, 0
    %v221 = vsel %vm192, %v179, 0
    %v224 = vsel %vm192, %v180, 0
    %v227 = vsel %vm192, %v181, 0
    %v230 = vsel %vm192, %v182, 0
    %v233 = vsel %vm192, %v183, 0
    %v236 = vsel %vm192, %v184, 0
    %v239 = vsel %vm192, %v185, 0
    %241 = vmatprep.subr.bf16.mxu0 0
    %242 = vmatpush1.bf16.msra.mxu0 0
    %243 = vmatprep.subr.bf16.mxu0 0
    %244 = vmatpush1.bf16.msra.mxu0 0
    %245 = vmatprep.subr.bf16.mxu0 0
    %246 = vmatpush1.bf16.msra.mxu0 0
    %247 = vmatprep.subr.bf16.mxu0 0
    %248 = vmatpush1.bf16.msra.mxu0 0
    %249 = vmatprep.subr.bf16.mxu0 0
    %250 = vmatpush1.bf16.msra.mxu0 0
    %251 = vmatprep.subr.bf16.mxu0 0
    %252 = vmatpush1.bf16.msra.mxu0 0
    %253 = vmatprep.subr.bf16.mxu0 0
    %254 = vmatpush1.bf16.msra.mxu0 0
    %255 = vmatprep.subr.bf16.mxu0 0
    %256 = vmatpush1.bf16.msra.mxu0 %v190
    %257 = vmatprep.subr.bf16.mxu0 0
    %258 = vmatpush2.bf16.msra.mxu0 0
    %259 = vmatprep.subr.bf16.mxu0 0
    %260 = vmatpush2.bf16.msra.mxu0 0
    %261 = vmatprep.subr.bf16.mxu0 0
    %262 = vmatpush2.bf16.msra.mxu0 0
    %263 = vmatprep.subr.bf16.mxu0 0
    %264 = vmatpush2.bf16.msra.mxu0 0
    %265 = vmatprep.subr.bf16.mxu0 0
    %266 = vmatpush2.bf16.msra.mxu0 0
    %267 = vmatprep.subr.bf16.mxu0 0
    %268 = vmatpush2.bf16.msra.mxu0 0
    %269 = vmatprep.subr.bf16.mxu0 0
    %270 = vmatpush2.bf16.msra.mxu0 0
    %271 = vmatprep.subr.bf16.mxu0 0
    %272 = vmatpush2.bf16.msra.mxu0 0
    %273 = vmatprep.mubr.bf16.mxu0 0
    %274 = vmatmul.mubr.bf16.gmra.mxu0 %v194
    %v275 = vpop.f32.mrf.mxu0
    %v276 = vadd.f32 %v104, %v275
    %v277 = vpop.f32.mrf.mxu0
    %v278 = vpop.f32.mrf.mxu0
    %v279 = vadd.f32 %v104, %v278
    %v280 = vpop.f32.mrf.mxu0
    %281 = vmatprep.mubr.bf16.mxu0 0
    %282 = vmatmul.mubr.bf16.gmra.mxu0 %v197
    %v283 = vpop.f32.mrf.mxu0
    %v284 = vadd.f32 %v104, %v283
    %v285 = vpop.f32.mrf.mxu0
    %v286 = vpop.f32.mrf.mxu0
    %v287 = vadd.f32 %v104, %v286
    %v288 = vpop.f32.mrf.mxu0
    %289 = vmatprep.mubr.bf16.mxu0 0
    %290 = vmatmul.mubr.bf16.gmra.mxu0 %v200
    %v291 = vpop.f32.mrf.mxu0
    %v292 = vadd.f32 %v104, %v291
    %v293 = vpop.f32.mrf.mxu0
    %v294 = vpop.f32.mrf.mxu0
    %v295 = vadd.f32 %v104, %v294
    %v296 = vpop.f32.mrf.mxu0
    %297 = vmatprep.mubr.bf16.mxu0 0
    %298 = vmatmul.mubr.bf16.gmra.mxu0 %v203
    %v299 = vpop.f32.mrf.mxu0
    %v300 = vadd.f32 %v104, %v299
    %v301 = vpop.f32.mrf.mxu0
    %v302 = vpop.f32.mrf.mxu0
    %v303 = vadd.f32 %v104, %v302
    %v304 = vpop.f32.mrf.mxu0
    %305 = vmatprep.mubr.bf16.mxu0 0
    %306 = vmatmul.mubr.bf16.gmra.mxu0 %v206
    %v307 = vpop.f32.mrf.mxu0
    %v308 = vadd.f32 %v104, %v307
    %v309 = vpop.f32.mrf.mxu0
    %v310 = vpop.f32.mrf.mxu0
    %v311 = vadd.f32 %v104, %v310
    %v312 = vpop.f32.mrf.mxu0
    %313 = vmatprep.mubr.bf16.mxu0 0
    %314 = vmatmul.mubr.bf16.gmra.mxu0 %v209
    %v315 = vpop.f32.mrf.mxu0
    %v316 = vadd.f32 %v104, %v315
    %v317 = vpop.f32.mrf.mxu0
    %v318 = vpop.f32.mrf.mxu0
    %v319 = vadd.f32 %v104, %v318
    %v320 = vpop.f32.mrf.mxu0
    %321 = vmatprep.mubr.bf16.mxu0 0
    %322 = vmatmul.mubr.bf16.gmra.mxu0 %v212
    %v323 = vpop.f32.mrf.mxu0
    %v324 = vadd.f32 %v104, %v323
    %v325 = vpop.f32.mrf.mxu0
    %v326 = vpop.f32.mrf.mxu0
    %v327 = vadd.f32 %v104, %v326
    %v328 = vpop.f32.mrf.mxu0
    %329 = vmatprep.mubr.bf16.mxu0 0
    %330 = vmatmul.mubr.bf16.gmra.mxu0 %v215
    %v331 = vpop.f32.mrf.mxu0
    %v332 = vadd.f32 %v104, %v331
    %v333 = vpop.f32.mrf.mxu0
    %v334 = vpop.f32.mrf.mxu0
    %v335 = vadd.f32 %v104, %v334
    %v336 = vpop.f32.mrf.mxu0
    %337 = vmatprep.mubr.bf16.mxu0 0
    %338 = vmatmul.mubr.bf16.gmra.mxu0 %v218
    %v339 = vpop.f32.mrf.mxu0
    %v340 = vadd.f32 %v104, %v339
    %v341 = vpop.f32.mrf.mxu0
    %v342 = vpop.f32.mrf.mxu0
    %v343 = vadd.f32 %v104, %v342
    %v344 = vpop.f32.mrf.mxu0
    %345 = vmatprep.mubr.bf16.mxu0 0
    %346 = vmatmul.mubr.bf16.gmra.mxu0 %v221
    %v347 = vpop.f32.mrf.mxu0
    %v348 = vadd.f32 %v104, %v347
    %v349 = vpop.f32.mrf.mxu0
    %v350 = vpop.f32.mrf.mxu0
    %v351 = vadd.f32 %v104, %v350
    %v352 = vpop.f32.mrf.mxu0
    %353 = vmatprep.mubr.bf16.mxu0 0
    %354 = vmatmul.mubr.bf16.gmra.mxu0 %v224
    %v355 = vpop.f32.mrf.mxu0
    %v356 = vadd.f32 %v104, %v355
    %v357 = vpop.f32.mrf.mxu0
    %v358 = vpop.f32.mrf.mxu0
    %v359 = vadd.f32 %v104, %v358
    %v360 = vpop.f32.mrf.mxu0
    %361 = vmatprep.mubr.bf16.mxu0 0
    %362 = vmatmul.mubr.bf16.gmra.mxu0 %v227
    %v363 = vpop.f32.mrf.mxu0
    %v364 = vadd.f32 %v104, %v363
    %v365 = vpop.f32.mrf.mxu0
    %v366 = vpop.f32.mrf.mxu0
    %v367 = vadd.f32 %v104, %v366
    %v368 = vpop.f32.mrf.mxu0
    %369 = vmatprep.mubr.bf16.mxu0 0
    %370 = vmatmul.mubr.bf16.gmra.mxu0 %v230
    %v371 = vpop.f32.mrf.mxu0
    %v372 = vadd.f32 %v104, %v371
    %v373 = vpop.f32.mrf.mxu0
    %v374 = vpop.f32.mrf.mxu0
    %v375 = vadd.f32 %v104, %v374
    %v376 = vpop.f32.mrf.mxu0
    %377 = vmatprep.mubr.bf16.mxu0 0
    %378 = vmatmul.mubr.bf16.gmra.mxu0 %v233
    %v379 = vpop.f32.mrf.mxu0
    %v380 = vadd.f32 %v104, %v379
    %v381 = vpop.f32.mrf.mxu0
    %v382 = vpop.f32.mrf.mxu0
    %v383 = vadd.f32 %v104, %v382
    %v384 = vpop.f32.mrf.mxu0
    %385 = vmatprep.mubr.bf16.mxu0 0
    %386 = vmatmul.mubr.bf16.gmra.mxu0 %v236
    %v387 = vpop.f32.mrf.mxu0
    %v388 = vadd.f32 %v104, %v387
    %v389 = vpop.f32.mrf.mxu0
    %v390 = vpop.f32.mrf.mxu0
    %v391 = vadd.f32 %v104, %v390
    %v392 = vpop.f32.mrf.mxu0
    %393 = vmatprep.mubr.bf16.mxu0 0
    %394 = vmatmul.mubr.bf16.gmra.mxu0 %v239
    %v395 = vpop.f32.mrf.mxu0
    %v396 = vadd.f32 %v104, %v395
    %v397 = vpop.f32.mrf.mxu0
    %v398 = vpop.f32.mrf.mxu0
    %v399 = vadd.f32 %v104, %v398
    %v400 = vpop.f32.mrf.mxu0
    %401 = vdwg.mxu0
    %v402 = vmax.f32 %v276, 0.0
    %v403 = vmax.f32 %v279, 0.0
    %v404 = vmax.f32 %v284, 0.0
    %v405 = vmax.f32 %v287, 0.0
    %v406 = vmax.f32 %v292, 0.0
    %v407 = vmax.f32 %v295, 0.0
    %v408 = vmax.f32 %v300, 0.0
    %v409 = vmax.f32 %v303, 0.0
    %v410 = vmax.f32 %v308, 0.0
    %v411 = vmax.f32 %v311, 0.0
    %v412 = vmax.f32 %v316, 0.0
    %v413 = vmax.f32 %v319, 0.0
    %v414 = vmax.f32 %v324, 0.0
    %v415 = vmax.f32 %v327, 0.0
    %v416 = vmax.f32 %v332, 0.0
    %v417 = vmax.f32 %v335, 0.0
    %v418 = vmax.f32 %v340, 0.0
    %v419 = vmax.f32 %v343, 0.0
    %v420 = vmax.f32 %v348, 0.0
    %v421 = vmax.f32 %v351, 0.0
    %v422 = vmax.f32 %v356, 0.0
    %v423 = vmax.f32 %v359, 0.0
    %v424 = vmax.f32 %v364, 0.0
    %v425 = vmax.f32 %v367, 0.0
    %v426 = vmax.f32 %v372, 0.0
    %v427 = vmax.f32 %v375, 0.0
    %v428 = vmax.f32 %v380, 0.0
    %v429 = vmax.f32 %v383, 0.0
    %v430 = vmax.f32 %v388, 0.0
    %v431 = vmax.f32 %v391, 0.0
    %v432 = vmax.f32 %v396, 0.0
    %v433 = vmax.f32 %v399, 0.0
    %v434 = vpack.c.bf16 %v403, %v402
    %v435 = vpack.c.bf16 %v405, %v404
    %v436 = vpack.c.bf16 %v407, %v406
    %v437 = vpack.c.bf16 %v409, %v408
    %v438 = vpack.c.bf16 %v411, %v410
    %v439 = vpack.c.bf16 %v413, %v412
    %v440 = vpack.c.bf16 %v415, %v414
    %v441 = vpack.c.bf16 %v417, %v416
    %v442 = vpack.c.bf16 %v419, %v418
    %v443 = vpack.c.bf16 %v421, %v420
    %v444 = vpack.c.bf16 %v423, %v422
    %v445 = vpack.c.bf16 %v425, %v424
    %v446 = vpack.c.bf16 %v427, %v426
    %v447 = vpack.c.bf16 %v429, %v428
    %v448 = vpack.c.bf16 %v431, %v430
    %v449 = vpack.c.bf16 %v433, %v432
    %v450 = vld [vmem:[%s4] sm:$0xf]
    %v451 = vld [vmem:[%s4 + $0x4] sm:$0xf]
    %v452 = vld [vmem:[%s4 + $0x8] sm:$0xf]
    %v453 = vld [vmem:[%s4 + $0xc] sm:$0xf]
    %v454 = vld [vmem:[%s4 + $0x10] sm:$0xf]
    %v455 = vld [vmem:[%s4 + $0x14] sm:$0xf]
    %v456 = vld [vmem:[%s4 + $0x18] sm:$0xf]
    %v457 = vld [vmem:[%s4 + $0x1c] sm:$0xf]
    %v458 = vld [vmem:[%s4 + $0x20] sm:$0xf]
    %v459 = vld [vmem:[%s4 + $0x24] sm:$0xf]
    %v460 = vld [vmem:[%s4 + $0x28] sm:$0xf]
    %v461 = vld [vmem:[%s4 + $0x2c] sm:$0xf]
    %v462 = vld [vmem:[%s4 + $0x30] sm:$0xf]
    %v463 = vld [vmem:[%s4 + $0x34] sm:$0xf]
    %v464 = vld [vmem:[%s4 + $0x38] sm:$0xf]
    %v465 = vld [vmem:[%s4 + $0x3c] sm:$0xf]
    %v482 = vunpack.c.l.b16 %v450
    %v483 = vunpack.c.l.b16 %v451
    %v484 = vunpack.c.l.b16 %v452
    %v485 = vunpack.c.l.b16 %v453
    %v486 = vunpack.c.l.b16 %v454
    %v487 = vunpack.c.l.b16 %v455
    %v488 = vunpack.c.l.b16 %v456
    %v489 = vunpack.c.l.b16 %v457
    %v490 = vunpack.c.l.b16 %v458
    %v491 = vunpack.c.l.b16 %v459
    %v492 = vunpack.c.l.b16 %v460
    %v493 = vunpack.c.l.b16 %v461
    %v494 = vunpack.c.l.b16 %v462
    %v495 = vunpack.c.l.b16 %v463
    %v496 = vunpack.c.l.b16 %v464
    %v497 = vunpack.c.l.b16 %v465
    %v498 = vpack.c.b16 %v483, %v482
    %v499 = vpack.c.b16 %v485, %v484
    %v500 = vpack.c.b16 %v487, %v486
    %v501 = vpack.c.b16 %v489, %v488
    %v502 = vpack.c.b16 %v491, %v490
    %v503 = vpack.c.b16 %v493, %v492
    %v504 = vpack.c.b16 %v495, %v494
    %v505 = vpack.c.b16 %v497, %v496
    %514 = vmatprep.subr.bf16.mxu0 0
    %515 = vmatpush1.bf16.msra.mxu0 %v505
    %516 = vmatprep.subr.bf16.mxu0 0
    %517 = vmatpush1.bf16.msra.mxu0 %v504
    %518 = vmatprep.subr.bf16.mxu0 0
    %519 = vmatpush1.bf16.msra.mxu0 %v503
    %520 = vmatprep.subr.bf16.mxu0 0
    %521 = vmatpush1.bf16.msra.mxu0 %v502
    %522 = vmatprep.subr.bf16.mxu0 0
    %523 = vmatpush1.bf16.msra.mxu0 %v501
    %524 = vmatprep.subr.bf16.mxu0 0
    %525 = vmatpush1.bf16.msra.mxu0 %v500
    %526 = vmatprep.subr.bf16.mxu0 0
    %527 = vmatpush1.bf16.msra.mxu0 %v499
    %528 = vmatprep.subr.bf16.mxu0 0
    %529 = vmatpush1.bf16.msra.mxu0 %v498
    %530 = vmatprep.subr.bf16.mxu0 0
    %531 = vmatpush2.bf16.msra.mxu0 0
    %532 = vmatprep.subr.bf16.mxu0 0
    %533 = vmatpush2.bf16.msra.mxu0 0
    %534 = vmatprep.subr.bf16.mxu0 0
    %535 = vmatpush2.bf16.msra.mxu0 0
    %536 = vmatprep.subr.bf16.mxu0 0
    %537 = vmatpush2.bf16.msra.mxu0 0
    %538 = vmatprep.subr.bf16.mxu0 0
    %539 = vmatpush2.bf16.msra.mxu0 0
    %540 = vmatprep.subr.bf16.mxu0 0
    %541 = vmatpush2.bf16.msra.mxu0 0
    %542 = vmatprep.subr.bf16.mxu0 0
    %543 = vmatpush2.bf16.msra.mxu0 0
    %544 = vmatprep.subr.bf16.mxu0 0
    %545 = vmatpush2.bf16.msra.mxu0 0
    %546 = vmatprep.mubr.bf16.mxu0 0
    %547 = vmatmul.mubr.bf16.gmra.mxu0 %v434
    %v548 = vpop.f32.mrf.mxu0
    %v549 = vadd.f32 0.0, %v548
    %v550 = vpop.f32.mrf.mxu0
    %v551 = vpop.f32.mrf.mxu0
    %v552 = vadd.f32 0.0, %v551
    %v553 = vpop.f32.mrf.mxu0
    %554 = vmatprep.mubr.bf16.mxu0 0
    %555 = vmatmul.mubr.bf16.gmra.mxu0 %v435
    %v556 = vpop.f32.mrf.mxu0
    %v557 = vadd.f32 0.0, %v556
    %v558 = vpop.f32.mrf.mxu0
    %v559 = vpop.f32.mrf.mxu0
    %v560 = vadd.f32 0.0, %v559
    %v561 = vpop.f32.mrf.mxu0
    %562 = vmatprep.mubr.bf16.mxu0 0
    %563 = vmatmul.mubr.bf16.gmra.mxu0 %v436
    %v564 = vpop.f32.mrf.mxu0
    %v565 = vadd.f32 0.0, %v564
    %v566 = vpop.f32.mrf.mxu0
    %v567 = vpop.f32.mrf.mxu0
    %v568 = vadd.f32 0.0, %v567
    %v569 = vpop.f32.mrf.mxu0
    %570 = vmatprep.mubr.bf16.mxu0 0
    %571 = vmatmul.mubr.bf16.gmra.mxu0 %v437
    %v572 = vpop.f32.mrf.mxu0
    %v573 = vadd.f32 0.0, %v572
    %v574 = vpop.f32.mrf.mxu0
    %v575 = vpop.f32.mrf.mxu0
    %v576 = vadd.f32 0.0, %v575
    %v577 = vpop.f32.mrf.mxu0
    %578 = vmatprep.mubr.bf16.mxu0 0
    %579 = vmatmul.mubr.bf16.gmra.mxu0 %v438
    %v580 = vpop.f32.mrf.mxu0
    %v581 = vadd.f32 0.0, %v580
    %v582 = vpop.f32.mrf.mxu0
    %v583 = vpop.f32.mrf.mxu0
    %v584 = vadd.f32 0.0, %v583
    %v585 = vpop.f32.mrf.mxu0
    %586 = vmatprep.mubr.bf16.mxu0 0
    %587 = vmatmul.mubr.bf16.gmra.mxu0 %v439
    %v588 = vpop.f32.mrf.mxu0
    %v589 = vadd.f32 0.0, %v588
    %v590 = vpop.f32.mrf.mxu0
    %v591 = vpop.f32.mrf.mxu0
    %v592 = vadd.f32 0.0, %v591
    %v593 = vpop.f32.mrf.mxu0
    %594 = vmatprep.mubr.bf16.mxu0 0
    %595 = vmatmul.mubr.bf16.gmra.mxu0 %v440
    %v596 = vpop.f32.mrf.mxu0
    %v597 = vadd.f32 0.0, %v596
    %v598 = vpop.f32.mrf.mxu0
    %v599 = vpop.f32.mrf.mxu0
    %v600 = vadd.f32 0.0, %v599
    %v601 = vpop.f32.mrf.mxu0
    %602 = vmatprep.mubr.bf16.mxu0 0
    %603 = vmatmul.mubr.bf16.gmra.mxu0 %v441
    %v604 = vpop.f32.mrf.mxu0
    %v605 = vadd.f32 0.0, %v604
    %v606 = vpop.f32.mrf.mxu0
    %v607 = vpop.f32.mrf.mxu0
    %v608 = vadd.f32 0.0, %v607
    %v609 = vpop.f32.mrf.mxu0
    %610 = vmatprep.mubr.bf16.mxu0 0
    %611 = vmatmul.mubr.bf16.gmra.mxu0 %v442
    %v612 = vpop.f32.mrf.mxu0
    %v613 = vadd.f32 0.0, %v612
    %v614 = vpop.f32.mrf.mxu0
    %v615 = vpop.f32.mrf.mxu0
    %v616 = vadd.f32 0.0, %v615
    %v617 = vpop.f32.mrf.mxu0
    %618 = vmatprep.mubr.bf16.mxu0 0
    %619 = vmatmul.mubr.bf16.gmra.mxu0 %v443
    %v620 = vpop.f32.mrf.mxu0
    %v621 = vadd.f32 0.0, %v620
    %v622 = vpop.f32.mrf.mxu0
    %v623 = vpop.f32.mrf.mxu0
    %v624 = vadd.f32 0.0, %v623
    %v625 = vpop.f32.mrf.mxu0
    %626 = vmatprep.mubr.bf16.mxu0 0
    %627 = vmatmul.mubr.bf16.gmra.mxu0 %v444
    %v628 = vpop.f32.mrf.mxu0
    %v629 = vadd.f32 0.0, %v628
    %v630 = vpop.f32.mrf.mxu0
    %v631 = vpop.f32.mrf.mxu0
    %v632 = vadd.f32 0.0, %v631
    %v633 = vpop.f32.mrf.mxu0
    %634 = vmatprep.mubr.bf16.mxu0 0
    %635 = vmatmul.mubr.bf16.gmra.mxu0 %v445
    %v636 = vpop.f32.mrf.mxu0
    %v637 = vadd.f32 0.0, %v636
    %v638 = vpop.f32.mrf.mxu0
    %v639 = vpop.f32.mrf.mxu0
    %v640 = vadd.f32 0.0, %v639
    %v641 = vpop.f32.mrf.mxu0
    %642 = vmatprep.mubr.bf16.mxu0 0
    %643 = vmatmul.mubr.bf16.gmra.mxu0 %v446
    %v644 = vpop.f32.mrf.mxu0
    %v645 = vadd.f32 0.0, %v644
    %v646 = vpop.f32.mrf.mxu0
    %v647 = vpop.f32.mrf.mxu0
    %v648 = vadd.f32 0.0, %v647
    %v649 = vpop.f32.mrf.mxu0
    %650 = vmatprep.mubr.bf16.mxu0 0
    %651 = vmatmul.mubr.bf16.gmra.mxu0 %v447
    %v652 = vpop.f32.mrf.mxu0
    %v653 = vadd.f32 0.0, %v652
    %v654 = vpop.f32.mrf.mxu0
    %v655 = vpop.f32.mrf.mxu0
    %v656 = vadd.f32 0.0, %v655
    %v657 = vpop.f32.mrf.mxu0
    %658 = vmatprep.mubr.bf16.mxu0 0
    %659 = vmatmul.mubr.bf16.gmra.mxu0 %v448
    %v660 = vpop.f32.mrf.mxu0
    %v661 = vadd.f32 0.0, %v660
    %v662 = vpop.f32.mrf.mxu0
    %v663 = vpop.f32.mrf.mxu0
    %v664 = vadd.f32 0.0, %v663
    %v665 = vpop.f32.mrf.mxu0
    %666 = vmatprep.mubr.bf16.mxu0 0
    %667 = vmatmul.mubr.bf16.gmra.mxu0 %v449
    %v668 = vpop.f32.mrf.mxu0
    %v669 = vadd.f32 0.0, %v668
    %v670 = vpop.f32.mrf.mxu0
    %v671 = vpop.f32.mrf.mxu0
    %v672 = vadd.f32 0.0, %v671
    %v673 = vpop.f32.mrf.mxu0
    %674 = vdwg.mxu0
    %v675 = vpack.c.bf16 %v552, %v549
    %v676 = vpack.c.bf16 %v560, %v557
    %v677 = vpack.c.bf16 %v568, %v565
    %v678 = vpack.c.bf16 %v576, %v573
    %v679 = vpack.c.bf16 %v584, %v581
    %v680 = vpack.c.bf16 %v592, %v589
    %v681 = vpack.c.bf16 %v600, %v597
    %v682 = vpack.c.bf16 %v608, %v605
    %v683 = vpack.c.bf16 %v616, %v613
    %v684 = vpack.c.bf16 %v624, %v621
    %v685 = vpack.c.bf16 %v632, %v629
    %v686 = vpack.c.bf16 %v640, %v637
    %v687 = vpack.c.bf16 %v648, %v645
    %v688 = vpack.c.bf16 %v656, %v653
    %v689 = vpack.c.bf16 %v664, %v661
    %v690 = vpack.c.bf16 %v672, %v669
    %v691 = vld [vmem:[#allocation2] sm:$0xff]
    %v692 = vld [vmem:[#allocation2 + $0x8] sm:$0xff]
    %v693 = vld [vmem:[#allocation2 + $0x10] sm:$0xff]
    %v694 = vld [vmem:[#allocation2 + $0x18] sm:$0xff]
    %v695 = vld [vmem:[#allocation2 + $0x20] sm:$0xff]
    %v696 = vld [vmem:[#allocation2 + $0x28] sm:$0xff]
    %v697 = vld [vmem:[#allocation2 + $0x30] sm:$0xff]
    %v698 = vld [vmem:[#allocation2 + $0x38] sm:$0xff]
    %v699 = vld [vmem:[#allocation2 + $0x40] sm:$0xff]
    %v700 = vld [vmem:[#allocation2 + $0x48] sm:$0xff]
    %v701 = vld [vmem:[#allocation2 + $0x50] sm:$0xff]
    %v702 = vld [vmem:[#allocation2 + $0x58] sm:$0xff]
    %v703 = vld [vmem:[#allocation2 + $0x60] sm:$0xff]
    %v704 = vld [vmem:[#allocation2 + $0x68] sm:$0xff]
    %v705 = vld [vmem:[#allocation2 + $0x70] sm:$0xff]
    %v706 = vld [vmem:[#allocation2 + $0x78] sm:$0xff]
    %v707 = vld [vmem:[#allocation2 + $0x80] sm:$0xff]
    %v708 = vld [vmem:[#allocation2 + $0x88] sm:$0xff]
    %v709 = vld [vmem:[#allocation2 + $0x90] sm:$0xff]
    %v710 = vld [vmem:[#allocation2 + $0x98] sm:$0xff]
    %v711 = vld [vmem:[#allocation2 + $0xa0] sm:$0xff]
    %v712 = vld [vmem:[#allocation2 + $0xa8] sm:$0xff]
    %v713 = vld [vmem:[#allocation2 + $0xb0] sm:$0xff]
    %v714 = vld [vmem:[#allocation2 + $0xb8] sm:$0xff]
    %v715 = vld [vmem:[#allocation2 + $0xc0] sm:$0xff]
    %v716 = vld [vmem:[#allocation2 + $0xc8] sm:$0xff]
    %v717 = vld [vmem:[#allocation2 + $0xd0] sm:$0xff]
    %v718 = vld [vmem:[#allocation2 + $0xd8] sm:$0xff]
    %v719 = vld [vmem:[#allocation2 + $0xe0] sm:$0xff]
    %v720 = vld [vmem:[#allocation2 + $0xe8] sm:$0xff]
    %v721 = vld [vmem:[#allocation2 + $0xf0] sm:$0xff]
    %v722 = vld [vmem:[#allocation2 + $0xf8] sm:$0xff]
    %v723 = vld [vmem:[%s5] sm:$0x1]
    %v725 = vlaneseq
    %v726 = vshrl.u32 %v725, 7
    %v727 = vsub.s32 0, %v726
    %v728 = vrot.slane %v723, %v727
    %v762 = vunpack.c.l.b16 %v691
    %v763 = vunpack.c.h.b16 %v691
    %v764 = vunpack.c.l.b16 %v692
    %v765 = vunpack.c.h.b16 %v692
    %v766 = vunpack.c.l.b16 %v693
    %v767 = vunpack.c.h.b16 %v693
    %v768 = vunpack.c.l.b16 %v694
    %v769 = vunpack.c.h.b16 %v694
    %v770 = vunpack.c.l.b16 %v695
    %v771 = vunpack.c.h.b16 %v695
    %v772 = vunpack.c.l.b16 %v696
    %v773 = vunpack.c.h.b16 %v696
    %v774 = vunpack.c.l.b16 %v697
    %v775 = vunpack.c.h.b16 %v697
    %v776 = vunpack.c.l.b16 %v698
    %v777 = vunpack.c.h.b16 %v698
    %v778 = vunpack.c.l.b16 %v699
    %v779 = vunpack.c.h.b16 %v699
    %v780 = vunpack.c.l.b16 %v700
    %v781 = vunpack.c.h.b16 %v700
    %v782 = vunpack.c.l.b16 %v701
    %v783 = vunpack.c.h.b16 %v701
    %v784 = vunpack.c.l.b16 %v702
    %v785 = vunpack.c.h.b16 %v702
    %v786 = vunpack.c.l.b16 %v703
    %v787 = vunpack.c.h.b16 %v703
    %v788 = vunpack.c.l.b16 %v704
    %v789 = vunpack.c.h.b16 %v704
    %v790 = vunpack.c.l.b16 %v705
    %v791 = vunpack.c.h.b16 %v705
    %v792 = vunpack.c.l.b16 %v706
    %v793 = vunpack.c.h.b16 %v706
    %v794 = vunpack.c.l.b16 %v707
    %v795 = vunpack.c.h.b16 %v707
    %v796 = vunpack.c.l.b16 %v708
    %v797 = vunpack.c.h.b16 %v708
    %v798 = vunpack.c.l.b16 %v709
    %v799 = vunpack.c.h.b16 %v709
    %v800 = vunpack.c.l.b16 %v710
    %v801 = vunpack.c.h.b16 %v710
    %v802 = vunpack.c.l.b16 %v711
    %v803 = vunpack.c.h.b16 %v711
    %v804 = vunpack.c.l.b16 %v712
    %v805 = vunpack.c.h.b16 %v712
    %v806 = vunpack.c.l.b16 %v713
    %v807 = vunpack.c.h.b16 %v713
    %v808 = vunpack.c.l.b16 %v714
    %v809 = vunpack.c.h.b16 %v714
    %v810 = vunpack.c.l.b16 %v715
    %v811 = vunpack.c.h.b16 %v715
    %v812 = vunpack.c.l.b16 %v716
    %v813 = vunpack.c.h.b16 %v716
    %v814 = vunpack.c.l.b16 %v717
    %v815 = vunpack.c.h.b16 %v717
    %v816 = vunpack.c.l.b16 %v718
    %v817 = vunpack.c.h.b16 %v718
    %v818 = vunpack.c.l.b16 %v719
    %v819 = vunpack.c.h.b16 %v719
    %v820 = vunpack.c.l.b16 %v720
    %v821 = vunpack.c.h.b16 %v720
    %v822 = vunpack.c.l.b16 %v721
    %v823 = vunpack.c.h.b16 %v721
    %v824 = vunpack.c.l.b16 %v722
    %v825 = vunpack.c.h.b16 %v722
    %v826 = vpack.c.b16 %v764, %v762
    %v827 = vpack.c.b16 %v765, %v763
    %v828 = vpack.c.b16 %v768, %v766
    %v829 = vpack.c.b16 %v769, %v767
    %v830 = vpack.c.b16 %v772, %v770
    %v831 = vpack.c.b16 %v773, %v771
    %v832 = vpack.c.b16 %v776, %v774
    %v833 = vpack.c.b16 %v777, %v775
    %v834 = vpack.c.b16 %v780, %v778
    %v835 = vpack.c.b16 %v781, %v779
    %v836 = vpack.c.b16 %v784, %v782
    %v837 = vpack.c.b16 %v785, %v783
    %v838 = vpack.c.b16 %v788, %v786
    %v839 = vpack.c.b16 %v789, %v787
    %v840 = vpack.c.b16 %v792, %v790
    %v841 = vpack.c.b16 %v793, %v791
    %v842 = vpack.c.b16 %v796, %v794
    %v843 = vpack.c.b16 %v797, %v795
    %v844 = vpack.c.b16 %v800, %v798
    %v845 = vpack.c.b16 %v801, %v799
    %v846 = vpack.c.b16 %v804, %v802
    %v847 = vpack.c.b16 %v805, %v803
    %v848 = vpack.c.b16 %v808, %v806
    %v849 = vpack.c.b16 %v809, %v807
    %v850 = vpack.c.b16 %v812, %v810
    %v851 = vpack.c.b16 %v813, %v811
    %v852 = vpack.c.b16 %v816, %v814
    %v853 = vpack.c.b16 %v817, %v815
    %v854 = vpack.c.b16 %v820, %v818
    %v855 = vpack.c.b16 %v821, %v819
    %v856 = vpack.c.b16 %v824, %v822
    %v857 = vpack.c.b16 %v825, %v823
    %890 = vmatprep.subr.bf16.mxu0 0
    %891 = vmatpush1.bf16.msra.mxu0 %v682
    %892 = vmatprep.subr.bf16.mxu0 0
    %893 = vmatpush1.bf16.msra.mxu0 %v681
    %894 = vmatprep.subr.bf16.mxu0 0
    %895 = vmatpush1.bf16.msra.mxu0 %v680
    %896 = vmatprep.subr.bf16.mxu0 0
    %897 = vmatpush1.bf16.msra.mxu0 %v679
    %898 = vmatprep.subr.bf16.mxu0 0
    %899 = vmatpush1.bf16.msra.mxu0 %v678
    %900 = vmatprep.subr.bf16.mxu0 0
    %901 = vmatpush1.bf16.msra.mxu0 %v677
    %902 = vmatprep.subr.bf16.mxu0 0
    %903 = vmatpush1.bf16.msra.mxu0 %v676
    %904 = vmatprep.subr.bf16.mxu0 0
    %905 = vmatpush1.bf16.msra.mxu0 %v675
    %906 = vmatprep.subr.bf16.mxu0 0
    %907 = vmatpush2.bf16.msra.mxu0 %v690
    %908 = vmatprep.subr.bf16.mxu0 0
    %909 = vmatpush2.bf16.msra.mxu0 %v689
    %910 = vmatprep.subr.bf16.mxu0 0
    %911 = vmatpush2.bf16.msra.mxu0 %v688
    %912 = vmatprep.subr.bf16.mxu0 0
    %913 = vmatpush2.bf16.msra.mxu0 %v687
    %914 = vmatprep.subr.bf16.mxu0 0
    %915 = vmatpush2.bf16.msra.mxu0 %v686
    %916 = vmatprep.subr.bf16.mxu0 0
    %917 = vmatpush2.bf16.msra.mxu0 %v685
    %918 = vmatprep.subr.bf16.mxu0 0
    %919 = vmatpush2.bf16.msra.mxu0 %v684
    %920 = vmatprep.subr.bf16.mxu0 0
    %921 = vmatpush2.bf16.msra.mxu0 %v683
    %922 = vmatprep.mubr.bf16.mxu0 %v827
    %923 = vmatmul.mubr.bf16.gmra.mxu0 %v826
    %v924 = vpop.f32.mrf.mxu0
    %v925 = vadd.f32 %v728, %v924
    %v926 = vpop.f32.mrf.mxu0
    %v927 = vpop.f32.mrf.mxu0
    %v928 = vadd.f32 %v728, %v927
    %v929 = vpop.f32.mrf.mxu0
    %930 = vmatprep.mubr.bf16.mxu0 %v829
    %931 = vmatmul.mubr.bf16.gmra.mxu0 %v828
    %v932 = vpop.f32.mrf.mxu0
    %v933 = vadd.f32 %v728, %v932
    %v934 = vpop.f32.mrf.mxu0
    %v935 = vpop.f32.mrf.mxu0
    %v936 = vadd.f32 %v728, %v935
    %v937 = vpop.f32.mrf.mxu0
    %938 = vmatprep.mubr.bf16.mxu0 %v831
    %939 = vmatmul.mubr.bf16.gmra.mxu0 %v830
    %v940 = vpop.f32.mrf.mxu0
    %v941 = vadd.f32 %v728, %v940
    %v942 = vpop.f32.mrf.mxu0
    %v943 = vpop.f32.mrf.mxu0
    %v944 = vadd.f32 %v728, %v943
    %v945 = vpop.f32.mrf.mxu0
    %946 = vmatprep.mubr.bf16.mxu0 %v833
    %947 = vmatmul.mubr.bf16.gmra.mxu0 %v832
    %v948 = vpop.f32.mrf.mxu0
    %v949 = vadd.f32 %v728, %v948
    %v950 = vpop.f32.mrf.mxu0
    %v951 = vpop.f32.mrf.mxu0
    %v952 = vadd.f32 %v728, %v951
    %v953 = vpop.f32.mrf.mxu0
    %954 = vmatprep.mubr.bf16.mxu0 %v835
    %955 = vmatmul.mubr.bf16.gmra.mxu0 %v834
    %v956 = vpop.f32.mrf.mxu0
    %v957 = vadd.f32 %v728, %v956
    %v958 = vpop.f32.mrf.mxu0
    %v959 = vpop.f32.mrf.mxu0
    %v960 = vadd.f32 %v728, %v959
    %v961 = vpop.f32.mrf.mxu0
    %962 = vmatprep.mubr.bf16.mxu0 %v837
    %963 = vmatmul.mubr.bf16.gmra.mxu0 %v836
    %v964 = vpop.f32.mrf.mxu0
    %v965 = vadd.f32 %v728, %v964
    %v966 = vpop.f32.mrf.mxu0
    %v967 = vpop.f32.mrf.mxu0
    %v968 = vadd.f32 %v728, %v967
    %v969 = vpop.f32.mrf.mxu0
    %970 = vmatprep.mubr.bf16.mxu0 %v839
    %971 = vmatmul.mubr.bf16.gmra.mxu0 %v838
    %v972 = vpop.f32.mrf.mxu0
    %v973 = vadd.f32 %v728, %v972
    %v974 = vpop.f32.mrf.mxu0
    %v975 = vpop.f32.mrf.mxu0
    %v976 = vadd.f32 %v728, %v975
    %v977 = vpop.f32.mrf.mxu0
    %978 = vmatprep.mubr.bf16.mxu0 %v841
    %979 = vmatmul.mubr.bf16.gmra.mxu0 %v840
    %v980 = vpop.f32.mrf.mxu0
    %v981 = vadd.f32 %v728, %v980
    %v982 = vpop.f32.mrf.mxu0
    %v983 = vpop.f32.mrf.mxu0
    %v984 = vadd.f32 %v728, %v983
    %v985 = vpop.f32.mrf.mxu0
    %986 = vmatprep.mubr.bf16.mxu0 %v843
    %987 = vmatmul.mubr.bf16.gmra.mxu0 %v842
    %v988 = vpop.f32.mrf.mxu0
    %v989 = vadd.f32 %v728, %v988
    %v990 = vpop.f32.mrf.mxu0
    %v991 = vpop.f32.mrf.mxu0
    %v992 = vadd.f32 %v728, %v991
    %v993 = vpop.f32.mrf.mxu0
    %994 = vmatprep.mubr.bf16.mxu0 %v845
    %995 = vmatmul.mubr.bf16.gmra.mxu0 %v844
    %v996 = vpop.f32.mrf.mxu0
    %v997 = vadd.f32 %v728, %v996
    %v998 = vpop.f32.mrf.mxu0
    %v999 = vpop.f32.mrf.mxu0
    %v1000 = vadd.f32 %v728, %v999
    %v1001 = vpop.f32.mrf.mxu0
    %1002 = vmatprep.mubr.bf16.mxu0 %v847
    %1003 = vmatmul.mubr.bf16.gmra.mxu0 %v846
    %v1004 = vpop.f32.mrf.mxu0
    %v1005 = vadd.f32 %v728, %v1004
    %v1006 = vpop.f32.mrf.mxu0
    %v1007 = vpop.f32.mrf.mxu0
    %v1008 = vadd.f32 %v728, %v1007
    %v1009 = vpop.f32.mrf.mxu0
    %1010 = vmatprep.mubr.bf16.mxu0 %v849
    %1011 = vmatmul.mubr.bf16.gmra.mxu0 %v848
    %v1012 = vpop.f32.mrf.mxu0
    %v1013 = vadd.f32 %v728, %v1012
    %v1014 = vpop.f32.mrf.mxu0
    %v1015 = vpop.f32.mrf.mxu0
    %v1016 = vadd.f32 %v728, %v1015
    %v1017 = vpop.f32.mrf.mxu0
    %1018 = vmatprep.mubr.bf16.mxu0 %v851
    %1019 = vmatmul.mubr.bf16.gmra.mxu0 %v850
    %v1020 = vpop.f32.mrf.mxu0
    %v1021 = vadd.f32 %v728, %v1020
    %v1022 = vpop.f32.mrf.mxu0
    %v1023 = vpop.f32.mrf.mxu0
    %v1024 = vadd.f32 %v728, %v1023
    %v1025 = vpop.f32.mrf.mxu0
    %1026 = vmatprep.mubr.bf16.mxu0 %v853
    %1027 = vmatmul.mubr.bf16.gmra.mxu0 %v852
    %v1028 = vpop.f32.mrf.mxu0
    %v1029 = vadd.f32 %v728, %v1028
    %v1030 = vpop.f32.mrf.mxu0
    %v1031 = vpop.f32.mrf.mxu0
    %v1032 = vadd.f32 %v728, %v1031
    %v1033 = vpop.f32.mrf.mxu0
    %1034 = vmatprep.mubr.bf16.mxu0 %v855
    %1035 = vmatmul.mubr.bf16.gmra.mxu0 %v854
    %v1036 = vpop.f32.mrf.mxu0
    %v1037 = vadd.f32 %v728, %v1036
    %v1038 = vpop.f32.mrf.mxu0
    %v1039 = vpop.f32.mrf.mxu0
    %v1040 = vadd.f32 %v728, %v1039
    %v1041 = vpop.f32.mrf.mxu0
    %1042 = vmatprep.mubr.bf16.mxu0 %v857
    %1043 = vmatmul.mubr.bf16.gmra.mxu0 %v856
    %v1044 = vpop.f32.mrf.mxu0
    %v1045 = vadd.f32 %v728, %v1044
    %v1046 = vpop.f32.mrf.mxu0
    %v1047 = vpop.f32.mrf.mxu0
    %v1048 = vadd.f32 %v728, %v1047
    %v1049 = vpop.f32.mrf.mxu0
    %1050 = vdwg.mxu0
    %v1051 = vmax.f32 %v925, 0.0
    %v1052 = vmax.f32 %v928, 0.0
    %v1053 = vmax.f32 %v933, 0.0
    %v1054 = vmax.f32 %v936, 0.0
    %v1055 = vmax.f32 %v941, 0.0
    %v1056 = vmax.f32 %v944, 0.0
    %v1057 = vmax.f32 %v949, 0.0
    %v1058 = vmax.f32 %v952, 0.0
    %v1059 = vmax.f32 %v957, 0.0
    %v1060 = vmax.f32 %v960, 0.0
    %v1061 = vmax.f32 %v965, 0.0
    %v1062 = vmax.f32 %v968, 0.0
    %v1063 = vmax.f32 %v973, 0.0
    %v1064 = vmax.f32 %v976, 0.0
    %v1065 = vmax.f32 %v981, 0.0
    %v1066 = vmax.f32 %v984, 0.0
    %v1067 = vmax.f32 %v989, 0.0
    %v1068 = vmax.f32 %v992, 0.0
    %v1069 = vmax.f32 %v997, 0.0
    %v1070 = vmax.f32 %v1000, 0.0
    %v1071 = vmax.f32 %v1005, 0.0
    %v1072 = vmax.f32 %v1008, 0.0
    %v1073 = vmax.f32 %v1013, 0.0
    %v1074 = vmax.f32 %v1016, 0.0
    %v1075 = vmax.f32 %v1021, 0.0
    %v1076 = vmax.f32 %v1024, 0.0
    %v1077 = vmax.f32 %v1029, 0.0
    %v1078 = vmax.f32 %v1032, 0.0
    %v1079 = vmax.f32 %v1037, 0.0
    %v1080 = vmax.f32 %v1040, 0.0
    %v1081 = vmax.f32 %v1045, 0.0
    %v1082 = vmax.f32 %v1048, 0.0
    %v1083 = vpack.c.bf16 %v1052, %v1051
    %v1084 = vpack.c.bf16 %v1054, %v1053
    %v1085 = vpack.c.bf16 %v1056, %v1055
    %v1086 = vpack.c.bf16 %v1058, %v1057
    %v1087 = vpack.c.bf16 %v1060, %v1059
    %v1088 = vpack.c.bf16 %v1062, %v1061
    %v1089 = vpack.c.bf16 %v1064, %v1063
    %v1090 = vpack.c.bf16 %v1066, %v1065
    %v1091 = vpack.c.bf16 %v1068, %v1067
    %v1092 = vpack.c.bf16 %v1070, %v1069
    %v1093 = vpack.c.bf16 %v1072, %v1071
    %v1094 = vpack.c.bf16 %v1074, %v1073
    %v1095 = vpack.c.bf16 %v1076, %v1075
    %v1096 = vpack.c.bf16 %v1078, %v1077
    %v1097 = vpack.c.bf16 %v1080, %v1079
    %v1098 = vpack.c.bf16 %v1082, %v1081
    %v1099 = vld [vmem:[%s6] sm:$0xf]
    %v1100 = vld [vmem:[%s6 + $0x4] sm:$0xf]
    %v1101 = vld [vmem:[%s6 + $0x8] sm:$0xf]
    %v1102 = vld [vmem:[%s6 + $0xc] sm:$0xf]
    %v1103 = vld [vmem:[%s6 + $0x10] sm:$0xf]
    %v1104 = vld [vmem:[%s6 + $0x14] sm:$0xf]
    %v1105 = vld [vmem:[%s6 + $0x18] sm:$0xf]
    %v1106 = vld [vmem:[%s6 + $0x1c] sm:$0xf]
    %v1107 = vld [vmem:[%s6 + $0x20] sm:$0xf]
    %v1108 = vld [vmem:[%s6 + $0x24] sm:$0xf]
    %v1109 = vld [vmem:[%s6 + $0x28] sm:$0xf]
    %v1110 = vld [vmem:[%s6 + $0x2c] sm:$0xf]
    %v1111 = vld [vmem:[%s6 + $0x30] sm:$0xf]
    %v1112 = vld [vmem:[%s6 + $0x34] sm:$0xf]
    %v1113 = vld [vmem:[%s6 + $0x38] sm:$0xf]
    %v1114 = vld [vmem:[%s6 + $0x3c] sm:$0xf]
    %v1131 = vunpack.c.l.b16 %v1099
    %v1132 = vunpack.c.l.b16 %v1100
    %v1133 = vunpack.c.l.b16 %v1101
    %v1134 = vunpack.c.l.b16 %v1102
    %v1135 = vunpack.c.l.b16 %v1103
    %v1136 = vunpack.c.l.b16 %v1104
    %v1137 = vunpack.c.l.b16 %v1105
    %v1138 = vunpack.c.l.b16 %v1106
    %v1139 = vunpack.c.l.b16 %v1107
    %v1140 = vunpack.c.l.b16 %v1108
    %v1141 = vunpack.c.l.b16 %v1109
    %v1142 = vunpack.c.l.b16 %v1110
    %v1143 = vunpack.c.l.b16 %v1111
    %v1144 = vunpack.c.l.b16 %v1112
    %v1145 = vunpack.c.l.b16 %v1113
    %v1146 = vunpack.c.l.b16 %v1114
    %v1147 = vpack.c.b16 %v1132, %v1131
    %v1148 = vpack.c.b16 %v1134, %v1133
    %v1149 = vpack.c.b16 %v1136, %v1135
    %v1150 = vpack.c.b16 %v1138, %v1137
    %v1151 = vpack.c.b16 %v1140, %v1139
    %v1152 = vpack.c.b16 %v1142, %v1141
    %v1153 = vpack.c.b16 %v1144, %v1143
    %v1154 = vpack.c.b16 %v1146, %v1145
    %1163 = vmatprep.subr.bf16.mxu0 0
    %1164 = vmatpush1.bf16.msra.mxu0 %v1154
    %1165 = vmatprep.subr.bf16.mxu0 0
    %1166 = vmatpush1.bf16.msra.mxu0 %v1153
    %1167 = vmatprep.subr.bf16.mxu0 0
    %1168 = vmatpush1.bf16.msra.mxu0 %v1152
    %1169 = vmatprep.subr.bf16.mxu0 0
    %1170 = vmatpush1.bf16.msra.mxu0 %v1151
    %1171 = vmatprep.subr.bf16.mxu0 0
    %1172 = vmatpush1.bf16.msra.mxu0 %v1150
    %1173 = vmatprep.subr.bf16.mxu0 0
    %1174 = vmatpush1.bf16.msra.mxu0 %v1149
    %1175 = vmatprep.subr.bf16.mxu0 0
    %1176 = vmatpush1.bf16.msra.mxu0 %v1148
    %1177 = vmatprep.subr.bf16.mxu0 0
    %1178 = vmatpush1.bf16.msra.mxu0 %v1147
    %1179 = vmatprep.subr.bf16.mxu0 0
    %1180 = vmatpush2.bf16.msra.mxu0 0
    %1181 = vmatprep.subr.bf16.mxu0 0
    %1182 = vmatpush2.bf16.msra.mxu0 0
    %1183 = vmatprep.subr.bf16.mxu0 0
    %1184 = vmatpush2.bf16.msra.mxu0 0
    %1185 = vmatprep.subr.bf16.mxu0 0
    %1186 = vmatpush2.bf16.msra.mxu0 0
    %1187 = vmatprep.subr.bf16.mxu0 0
    %1188 = vmatpush2.bf16.msra.mxu0 0
    %1189 = vmatprep.subr.bf16.mxu0 0
    %1190 = vmatpush2.bf16.msra.mxu0 0
    %1191 = vmatprep.subr.bf16.mxu0 0
    %1192 = vmatpush2.bf16.msra.mxu0 0
    %1193 = vmatprep.subr.bf16.mxu0 0
    %1194 = vmatpush2.bf16.msra.mxu0 0
    %1195 = vmatprep.mubr.bf16.mxu0 0
    %1196 = vmatmul.mubr.bf16.gmra.mxu0 %v1083
    %v1197 = vpop.f32.mrf.mxu0
    %v1198 = vadd.f32 0.0, %v1197
    %v1199 = vpop.f32.mrf.mxu0
    %v1200 = vpop.f32.mrf.mxu0
    %v1201 = vadd.f32 0.0, %v1200
    %v1202 = vpop.f32.mrf.mxu0
    %1203 = vmatprep.mubr.bf16.mxu0 0
    %1204 = vmatmul.mubr.bf16.gmra.mxu0 %v1084
    %v1205 = vpop.f32.mrf.mxu0
    %v1206 = vadd.f32 0.0, %v1205
    %v1207 = vpop.f32.mrf.mxu0
    %v1208 = vpop.f32.mrf.mxu0
    %v1209 = vadd.f32 0.0, %v1208
    %v1210 = vpop.f32.mrf.mxu0
    %1211 = vmatprep.mubr.bf16.mxu0 0
    %1212 = vmatmul.mubr.bf16.gmra.mxu0 %v1085
    %v1213 = vpop.f32.mrf.mxu0
    %v1214 = vadd.f32 0.0, %v1213
    %v1215 = vpop.f32.mrf.mxu0
    %v1216 = vpop.f32.mrf.mxu0
    %v1217 = vadd.f32 0.0, %v1216
    %v1218 = vpop.f32.mrf.mxu0
    %1219 = vmatprep.mubr.bf16.mxu0 0
    %1220 = vmatmul.mubr.bf16.gmra.mxu0 %v1086
    %v1221 = vpop.f32.mrf.mxu0
    %v1222 = vadd.f32 0.0, %v1221
    %v1223 = vpop.f32.mrf.mxu0
    %v1224 = vpop.f32.mrf.mxu0
    %v1225 = vadd.f32 0.0, %v1224
    %v1226 = vpop.f32.mrf.mxu0
    %1227 = vmatprep.mubr.bf16.mxu0 0
    %1228 = vmatmul.mubr.bf16.gmra.mxu0 %v1087
    %v1229 = vpop.f32.mrf.mxu0
    %v1230 = vadd.f32 0.0, %v1229
    %v1231 = vpop.f32.mrf.mxu0
    %v1232 = vpop.f32.mrf.mxu0
    %v1233 = vadd.f32 0.0, %v1232
    %v1234 = vpop.f32.mrf.mxu0
    %1235 = vmatprep.mubr.bf16.mxu0 0
    %1236 = vmatmul.mubr.bf16.gmra.mxu0 %v1088
    %v1237 = vpop.f32.mrf.mxu0
    %v1238 = vadd.f32 0.0, %v1237
    %v1239 = vpop.f32.mrf.mxu0
    %v1240 = vpop.f32.mrf.mxu0
    %v1241 = vadd.f32 0.0, %v1240
    %v1242 = vpop.f32.mrf.mxu0
    %1243 = vmatprep.mubr.bf16.mxu0 0
    %1244 = vmatmul.mubr.bf16.gmra.mxu0 %v1089
    %v1245 = vpop.f32.mrf.mxu0
    %v1246 = vadd.f32 0.0, %v1245
    %v1247 = vpop.f32.mrf.mxu0
    %v1248 = vpop.f32.mrf.mxu0
    %v1249 = vadd.f32 0.0, %v1248
    %v1250 = vpop.f32.mrf.mxu0
    %1251 = vmatprep.mubr.bf16.mxu0 0
    %1252 = vmatmul.mubr.bf16.gmra.mxu0 %v1090
    %v1253 = vpop.f32.mrf.mxu0
    %v1254 = vadd.f32 0.0, %v1253
    %v1255 = vpop.f32.mrf.mxu0
    %v1256 = vpop.f32.mrf.mxu0
    %v1257 = vadd.f32 0.0, %v1256
    %v1258 = vpop.f32.mrf.mxu0
    %1259 = vmatprep.mubr.bf16.mxu0 0
    %1260 = vmatmul.mubr.bf16.gmra.mxu0 %v1091
    %v1261 = vpop.f32.mrf.mxu0
    %v1262 = vadd.f32 0.0, %v1261
    %v1263 = vpop.f32.mrf.mxu0
    %v1264 = vpop.f32.mrf.mxu0
    %v1265 = vadd.f32 0.0, %v1264
    %v1266 = vpop.f32.mrf.mxu0
    %1267 = vmatprep.mubr.bf16.mxu0 0
    %1268 = vmatmul.mubr.bf16.gmra.mxu0 %v1092
    %v1269 = vpop.f32.mrf.mxu0
    %v1270 = vadd.f32 0.0, %v1269
    %v1271 = vpop.f32.mrf.mxu0
    %v1272 = vpop.f32.mrf.mxu0
    %v1273 = vadd.f32 0.0, %v1272
    %v1274 = vpop.f32.mrf.mxu0
    %1275 = vmatprep.mubr.bf16.mxu0 0
    %1276 = vmatmul.mubr.bf16.gmra.mxu0 %v1093
    %v1277 = vpop.f32.mrf.mxu0
    %v1278 = vadd.f32 0.0, %v1277
    %v1279 = vpop.f32.mrf.mxu0
    %v1280 = vpop.f32.mrf.mxu0
    %v1281 = vadd.f32 0.0, %v1280
    %v1282 = vpop.f32.mrf.mxu0
    %1283 = vmatprep.mubr.bf16.mxu0 0
    %1284 = vmatmul.mubr.bf16.gmra.mxu0 %v1094
    %v1285 = vpop.f32.mrf.mxu0
    %v1286 = vadd.f32 0.0, %v1285
    %v1287 = vpop.f32.mrf.mxu0
    %v1288 = vpop.f32.mrf.mxu0
    %v1289 = vadd.f32 0.0, %v1288
    %v1290 = vpop.f32.mrf.mxu0
    %1291 = vmatprep.mubr.bf16.mxu0 0
    %1292 = vmatmul.mubr.bf16.gmra.mxu0 %v1095
    %v1293 = vpop.f32.mrf.mxu0
    %v1294 = vadd.f32 0.0, %v1293
    %v1295 = vpop.f32.mrf.mxu0
    %v1296 = vpop.f32.mrf.mxu0
    %v1297 = vadd.f32 0.0, %v1296
    %v1298 = vpop.f32.mrf.mxu0
    %1299 = vmatprep.mubr.bf16.mxu0 0
    %1300 = vmatmul.mubr.bf16.gmra.mxu0 %v1096
    %v1301 = vpop.f32.mrf.mxu0
    %v1302 = vadd.f32 0.0, %v1301
    %v1303 = vpop.f32.mrf.mxu0
    %v1304 = vpop.f32.mrf.mxu0
    %v1305 = vadd.f32 0.0, %v1304
    %v1306 = vpop.f32.mrf.mxu0
    %1307 = vmatprep.mubr.bf16.mxu0 0
    %1308 = vmatmul.mubr.bf16.gmra.mxu0 %v1097
    %v1309 = vpop.f32.mrf.mxu0
    %v1310 = vadd.f32 0.0, %v1309
    %v1311 = vpop.f32.mrf.mxu0
    %v1312 = vpop.f32.mrf.mxu0
    %v1313 = vadd.f32 0.0, %v1312
    %v1314 = vpop.f32.mrf.mxu0
    %1315 = vmatprep.mubr.bf16.mxu0 0
    %1316 = vmatmul.mubr.bf16.gmra.mxu0 %v1098
    %v1317 = vpop.f32.mrf.mxu0
    %v1318 = vadd.f32 0.0, %v1317
    %v1319 = vpop.f32.mrf.mxu0
    %v1320 = vpop.f32.mrf.mxu0
    %v1321 = vadd.f32 0.0, %v1320
    %v1322 = vpop.f32.mrf.mxu0
    %1323 = vdwg.mxu0
    %v1324 = vpack.c.bf16 %v1201, %v1198
    %v1325 = vpack.c.bf16 %v1209, %v1206
    %v1326 = vpack.c.bf16 %v1217, %v1214
    %v1327 = vpack.c.bf16 %v1225, %v1222
    %v1328 = vpack.c.bf16 %v1233, %v1230
    %v1329 = vpack.c.bf16 %v1241, %v1238
    %v1330 = vpack.c.bf16 %v1249, %v1246
    %v1331 = vpack.c.bf16 %v1257, %v1254
    %v1332 = vpack.c.bf16 %v1265, %v1262
    %v1333 = vpack.c.bf16 %v1273, %v1270
    %v1334 = vpack.c.bf16 %v1281, %v1278
    %v1335 = vpack.c.bf16 %v1289, %v1286
    %v1336 = vpack.c.bf16 %v1297, %v1294
    %v1337 = vpack.c.bf16 %v1305, %v1302
    %v1338 = vpack.c.bf16 %v1313, %v1310
    %v1339 = vpack.c.bf16 %v1321, %v1318
    %v1340 = vld [vmem:[%s7] sm:$0x1]
    %v1342 = vlaneseq
    %v1343 = vshrl.u32 %v1342, 7
    %v1344 = vsub.s32 0, %v1343
    %v1345 = vrot.slane %v1340, %v1344
    %1347 = vmatprep.subr.bf16.mxu0 0
    %1348 = vmatpush1.bf16.msra.mxu0 %v1331
    %1349 = vmatprep.subr.bf16.mxu0 0
    %1350 = vmatpush1.bf16.msra.mxu0 %v1330
    %1351 = vmatprep.subr.bf16.mxu0 0
    %1352 = vmatpush1.bf16.msra.mxu0 %v1329
    %1353 = vmatprep.subr.bf16.mxu0 0
    %1354 = vmatpush1.bf16.msra.mxu0 %v1328
    %1355 = vmatprep.subr.bf16.mxu0 0
    %1356 = vmatpush1.bf16.msra.mxu0 %v1327
    %1357 = vmatprep.subr.bf16.mxu0 0
    %1358 = vmatpush1.bf16.msra.mxu0 %v1326
    %1359 = vmatprep.subr.bf16.mxu0 0
    %1360 = vmatpush1.bf16.msra.mxu0 %v1325
    %1361 = vmatprep.subr.bf16.mxu0 0
    %1362 = vmatpush1.bf16.msra.mxu0 %v1324
    %1363 = vmatprep.subr.bf16.mxu0 0
    %1364 = vmatpush2.bf16.msra.mxu0 %v1339
    %1365 = vmatprep.subr.bf16.mxu0 0
    %1366 = vmatpush2.bf16.msra.mxu0 %v1338
    %1367 = vmatprep.subr.bf16.mxu0 0
    %1368 = vmatpush2.bf16.msra.mxu0 %v1337
    %1369 = vmatprep.subr.bf16.mxu0 0
    %1370 = vmatpush2.bf16.msra.mxu0 %v1336
    %1371 = vmatprep.subr.bf16.mxu0 0
    %1372 = vmatpush2.bf16.msra.mxu0 %v1335
    %1373 = vmatprep.subr.bf16.mxu0 0
    %1374 = vmatpush2.bf16.msra.mxu0 %v1334
    %1375 = vmatprep.subr.bf16.mxu0 0
    %1376 = vmatpush2.bf16.msra.mxu0 %v1333
    %1377 = vmatprep.subr.bf16.mxu0 0
    %1378 = vmatpush2.bf16.msra.mxu0 %v1332
    %1379 = vmatprep.mubr.bf16.mxu0 %v827
    %1380 = vmatmul.mubr.bf16.gmra.mxu0 %v826
    %v1381 = vpop.f32.mrf.mxu0
    %v1382 = vadd.f32 %v1345, %v1381
    %v1383 = vpop.f32.mrf.mxu0
    %v1384 = vpop.f32.mrf.mxu0
    %v1385 = vadd.f32 %v1345, %v1384
    %v1386 = vpop.f32.mrf.mxu0
    %1387 = vmatprep.mubr.bf16.mxu0 %v829
    %1388 = vmatmul.mubr.bf16.gmra.mxu0 %v828
    %v1389 = vpop.f32.mrf.mxu0
    %v1390 = vadd.f32 %v1345, %v1389
    %v1391 = vpop.f32.mrf.mxu0
    %v1392 = vpop.f32.mrf.mxu0
    %v1393 = vadd.f32 %v1345, %v1392
    %v1394 = vpop.f32.mrf.mxu0
    %1395 = vmatprep.mubr.bf16.mxu0 %v831
    %1396 = vmatmul.mubr.bf16.gmra.mxu0 %v830
    %v1397 = vpop.f32.mrf.mxu0
    %v1398 = vadd.f32 %v1345, %v1397
    %v1399 = vpop.f32.mrf.mxu0
    %v1400 = vpop.f32.mrf.mxu0
    %v1401 = vadd.f32 %v1345, %v1400
    %v1402 = vpop.f32.mrf.mxu0
    %1403 = vmatprep.mubr.bf16.mxu0 %v833
    %1404 = vmatmul.mubr.bf16.gmra.mxu0 %v832
    %v1405 = vpop.f32.mrf.mxu0
    %v1406 = vadd.f32 %v1345, %v1405
    %v1407 = vpop.f32.mrf.mxu0
    %v1408 = vpop.f32.mrf.mxu0
    %v1409 = vadd.f32 %v1345, %v1408
    %v1410 = vpop.f32.mrf.mxu0
    %1411 = vmatprep.mubr.bf16.mxu0 %v835
    %1412 = vmatmul.mubr.bf16.gmra.mxu0 %v834
    %v1413 = vpop.f32.mrf.mxu0
    %v1414 = vadd.f32 %v1345, %v1413
    %v1415 = vpop.f32.mrf.mxu0
    %v1416 = vpop.f32.mrf.mxu0
    %v1417 = vadd.f32 %v1345, %v1416
    %v1418 = vpop.f32.mrf.mxu0
    %1419 = vmatprep.mubr.bf16.mxu0 %v837
    %1420 = vmatmul.mubr.bf16.gmra.mxu0 %v836
    %v1421 = vpop.f32.mrf.mxu0
    %v1422 = vadd.f32 %v1345, %v1421
    %v1423 = vpop.f32.mrf.mxu0
    %v1424 = vpop.f32.mrf.mxu0
    %v1425 = vadd.f32 %v1345, %v1424
    %v1426 = vpop.f32.mrf.mxu0
    %1427 = vmatprep.mubr.bf16.mxu0 %v839
    %1428 = vmatmul.mubr.bf16.gmra.mxu0 %v838
    %v1429 = vpop.f32.mrf.mxu0
    %v1430 = vadd.f32 %v1345, %v1429
    %v1431 = vpop.f32.mrf.mxu0
    %v1432 = vpop.f32.mrf.mxu0
    %v1433 = vadd.f32 %v1345, %v1432
    %v1434 = vpop.f32.mrf.mxu0
    %1435 = vmatprep.mubr.bf16.mxu0 %v841
    %1436 = vmatmul.mubr.bf16.gmra.mxu0 %v840
    %v1437 = vpop.f32.mrf.mxu0
    %v1438 = vadd.f32 %v1345, %v1437
    %v1439 = vpop.f32.mrf.mxu0
    %v1440 = vpop.f32.mrf.mxu0
    %v1441 = vadd.f32 %v1345, %v1440
    %v1442 = vpop.f32.mrf.mxu0
    %1443 = vmatprep.mubr.bf16.mxu0 %v843
    %1444 = vmatmul.mubr.bf16.gmra.mxu0 %v842
    %v1445 = vpop.f32.mrf.mxu0
    %v1446 = vadd.f32 %v1345, %v1445
    %v1447 = vpop.f32.mrf.mxu0
    %v1448 = vpop.f32.mrf.mxu0
    %v1449 = vadd.f32 %v1345, %v1448
    %v1450 = vpop.f32.mrf.mxu0
    %1451 = vmatprep.mubr.bf16.mxu0 %v845
    %1452 = vmatmul.mubr.bf16.gmra.mxu0 %v844
    %v1453 = vpop.f32.mrf.mxu0
    %v1454 = vadd.f32 %v1345, %v1453
    %v1455 = vpop.f32.mrf.mxu0
    %v1456 = vpop.f32.mrf.mxu0
    %v1457 = vadd.f32 %v1345, %v1456
    %v1458 = vpop.f32.mrf.mxu0
    %1459 = vmatprep.mubr.bf16.mxu0 %v847
    %1460 = vmatmul.mubr.bf16.gmra.mxu0 %v846
    %v1461 = vpop.f32.mrf.mxu0
    %v1462 = vadd.f32 %v1345, %v1461
    %v1463 = vpop.f32.mrf.mxu0
    %v1464 = vpop.f32.mrf.mxu0
    %v1465 = vadd.f32 %v1345, %v1464
    %v1466 = vpop.f32.mrf.mxu0
    %1467 = vmatprep.mubr.bf16.mxu0 %v849
    %1468 = vmatmul.mubr.bf16.gmra.mxu0 %v848
    %v1469 = vpop.f32.mrf.mxu0
    %v1470 = vadd.f32 %v1345, %v1469
    %v1471 = vpop.f32.mrf.mxu0
    %v1472 = vpop.f32.mrf.mxu0
    %v1473 = vadd.f32 %v1345, %v1472
    %v1474 = vpop.f32.mrf.mxu0
    %1475 = vmatprep.mubr.bf16.mxu0 %v851
    %1476 = vmatmul.mubr.bf16.gmra.mxu0 %v850
    %v1477 = vpop.f32.mrf.mxu0
    %v1478 = vadd.f32 %v1345, %v1477
    %v1479 = vpop.f32.mrf.mxu0
    %v1480 = vpop.f32.mrf.mxu0
    %v1481 = vadd.f32 %v1345, %v1480
    %v1482 = vpop.f32.mrf.mxu0
    %1483 = vmatprep.mubr.bf16.mxu0 %v853
    %1484 = vmatmul.mubr.bf16.gmra.mxu0 %v852
    %v1485 = vpop.f32.mrf.mxu0
    %v1486 = vadd.f32 %v1345, %v1485
    %v1487 = vpop.f32.mrf.mxu0
    %v1488 = vpop.f32.mrf.mxu0
    %v1489 = vadd.f32 %v1345, %v1488
    %v1490 = vpop.f32.mrf.mxu0
    %1491 = vmatprep.mubr.bf16.mxu0 %v855
    %1492 = vmatmul.mubr.bf16.gmra.mxu0 %v854
    %v1493 = vpop.f32.mrf.mxu0
    %v1494 = vadd.f32 %v1345, %v1493
    %v1495 = vpop.f32.mrf.mxu0
    %v1496 = vpop.f32.mrf.mxu0
    %v1497 = vadd.f32 %v1345, %v1496
    %v1498 = vpop.f32.mrf.mxu0
    %1499 = vmatprep.mubr.bf16.mxu0 %v857
    %1500 = vmatmul.mubr.bf16.gmra.mxu0 %v856
    %v1501 = vpop.f32.mrf.mxu0
    %v1502 = vadd.f32 %v1345, %v1501
    %v1503 = vpop.f32.mrf.mxu0
    %v1504 = vpop.f32.mrf.mxu0
    %v1505 = vadd.f32 %v1345, %v1504
    %v1506 = vpop.f32.mrf.mxu0
    %1507 = vdwg.mxu0
    %v1508 = vmax.f32 %v1382, 0.0
    %v1509 = vmax.f32 %v1385, 0.0
    %v1510 = vmax.f32 %v1390, 0.0
    %v1511 = vmax.f32 %v1393, 0.0
    %v1512 = vmax.f32 %v1398, 0.0
    %v1513 = vmax.f32 %v1401, 0.0
    %v1514 = vmax.f32 %v1406, 0.0
    %v1515 = vmax.f32 %v1409, 0.0
    %v1516 = vmax.f32 %v1414, 0.0
    %v1517 = vmax.f32 %v1417, 0.0
    %v1518 = vmax.f32 %v1422, 0.0
    %v1519 = vmax.f32 %v1425, 0.0
    %v1520 = vmax.f32 %v1430, 0.0
    %v1521 = vmax.f32 %v1433, 0.0
    %v1522 = vmax.f32 %v1438, 0.0
    %v1523 = vmax.f32 %v1441, 0.0
    %v1524 = vmax.f32 %v1446, 0.0
    %v1525 = vmax.f32 %v1449, 0.0
    %v1526 = vmax.f32 %v1454, 0.0
    %v1527 = vmax.f32 %v1457, 0.0
    %v1528 = vmax.f32 %v1462, 0.0
    %v1529 = vmax.f32 %v1465, 0.0
    %v1530 = vmax.f32 %v1470, 0.0
    %v1531 = vmax.f32 %v1473, 0.0
    %v1532 = vmax.f32 %v1478, 0.0
    %v1533 = vmax.f32 %v1481, 0.0
    %v1534 = vmax.f32 %v1486, 0.0
    %v1535 = vmax.f32 %v1489, 0.0
    %v1536 = vmax.f32 %v1494, 0.0
    %v1537 = vmax.f32 %v1497, 0.0
    %v1538 = vmax.f32 %v1502, 0.0
    %v1539 = vmax.f32 %v1505, 0.0
    %v1540 = vpack.c.bf16 %v1509, %v1508
    %v1541 = vpack.c.bf16 %v1511, %v1510
    %v1542 = vpack.c.bf16 %v1513, %v1512
    %v1543 = vpack.c.bf16 %v1515, %v1514
    %v1544 = vpack.c.bf16 %v1517, %v1516
    %v1545 = vpack.c.bf16 %v1519, %v1518
    %v1546 = vpack.c.bf16 %v1521, %v1520
    %v1547 = vpack.c.bf16 %v1523, %v1522
    %v1548 = vpack.c.bf16 %v1525, %v1524
    %v1549 = vpack.c.bf16 %v1527, %v1526
    %v1550 = vpack.c.bf16 %v1529, %v1528
    %v1551 = vpack.c.bf16 %v1531, %v1530
    %v1552 = vpack.c.bf16 %v1533, %v1532
    %v1553 = vpack.c.bf16 %v1535, %v1534
    %v1554 = vpack.c.bf16 %v1537, %v1536
    %v1555 = vpack.c.bf16 %v1539, %v1538
    %v1556 = vld [vmem:[#allocation5] sm:$0xf]
    %v1557 = vld [vmem:[#allocation5 + $0x4] sm:$0xf]
    %v1558 = vld [vmem:[#allocation5 + $0x8] sm:$0xf]
    %v1559 = vld [vmem:[#allocation5 + $0xc] sm:$0xf]
    %v1560 = vld [vmem:[#allocation5 + $0x10] sm:$0xf]
    %v1561 = vld [vmem:[#allocation5 + $0x14] sm:$0xf]
    %v1562 = vld [vmem:[#allocation5 + $0x18] sm:$0xf]
    %v1563 = vld [vmem:[#allocation5 + $0x1c] sm:$0xf]
    %v1564 = vld [vmem:[#allocation5 + $0x20] sm:$0xf]
    %v1565 = vld [vmem:[#allocation5 + $0x24] sm:$0xf]
    %v1566 = vld [vmem:[#allocation5 + $0x28] sm:$0xf]
    %v1567 = vld [vmem:[#allocation5 + $0x2c] sm:$0xf]
    %v1568 = vld [vmem:[#allocation5 + $0x30] sm:$0xf]
    %v1569 = vld [vmem:[#allocation5 + $0x34] sm:$0xf]
    %v1570 = vld [vmem:[#allocation5 + $0x38] sm:$0xf]
    %v1571 = vld [vmem:[#allocation5 + $0x3c] sm:$0xf]
    %v1572 = vld [vmem:[%s9] sm:$0x1]
    %v1574 = vlaneseq
    %v1575 = vshrl.u32 %v1574, 7
    %v1576 = vsub.s32 0, %v1575
    %v1577 = vrot.slane %v1572, %v1576
    %v1595 = vunpack.c.l.b16 %v1556
    %v1596 = vunpack.c.l.b16 %v1557
    %v1597 = vunpack.c.l.b16 %v1558
    %v1598 = vunpack.c.l.b16 %v1559
    %v1599 = vunpack.c.l.b16 %v1560
    %v1600 = vunpack.c.l.b16 %v1561
    %v1601 = vunpack.c.l.b16 %v1562
    %v1602 = vunpack.c.l.b16 %v1563
    %v1603 = vunpack.c.l.b16 %v1564
    %v1604 = vunpack.c.l.b16 %v1565
    %v1605 = vunpack.c.l.b16 %v1566
    %v1606 = vunpack.c.l.b16 %v1567
    %v1607 = vunpack.c.l.b16 %v1568
    %v1608 = vunpack.c.l.b16 %v1569
    %v1609 = vunpack.c.l.b16 %v1570
    %v1610 = vunpack.c.l.b16 %v1571
    %v1611 = vpack.c.b16 %v1596, %v1595
    %v1612 = vpack.c.b16 %v1598, %v1597
    %v1613 = vpack.c.b16 %v1600, %v1599
    %v1614 = vpack.c.b16 %v1602, %v1601
    %v1615 = vpack.c.b16 %v1604, %v1603
    %v1616 = vpack.c.b16 %v1606, %v1605
    %v1617 = vpack.c.b16 %v1608, %v1607
    %v1618 = vpack.c.b16 %v1610, %v1609
    %1627 = vmatprep.subr.bf16.mxu0 0
    %1628 = vmatpush1.bf16.msra.mxu0 %v1618
    %1629 = vmatprep.subr.bf16.mxu0 0
    %1630 = vmatpush1.bf16.msra.mxu0 %v1617
    %1631 = vmatprep.subr.bf16.mxu0 0
    %1632 = vmatpush1.bf16.msra.mxu0 %v1616
    %1633 = vmatprep.subr.bf16.mxu0 0
    %1634 = vmatpush1.bf16.msra.mxu0 %v1615
    %1635 = vmatprep.subr.bf16.mxu0 0
    %1636 = vmatpush1.bf16.msra.mxu0 %v1614
    %1637 = vmatprep.subr.bf16.mxu0 0
    %1638 = vmatpush1.bf16.msra.mxu0 %v1613
    %1639 = vmatprep.subr.bf16.mxu0 0
    %1640 = vmatpush1.bf16.msra.mxu0 %v1612
    %1641 = vmatprep.subr.bf16.mxu0 0
    %1642 = vmatpush1.bf16.msra.mxu0 %v1611
    %1643 = vmatprep.subr.bf16.mxu0 0
    %1644 = vmatpush2.bf16.msra.mxu0 0
    %1645 = vmatprep.subr.bf16.mxu0 0
    %1646 = vmatpush2.bf16.msra.mxu0 0
    %1647 = vmatprep.subr.bf16.mxu0 0
    %1648 = vmatpush2.bf16.msra.mxu0 0
    %1649 = vmatprep.subr.bf16.mxu0 0
    %1650 = vmatpush2.bf16.msra.mxu0 0
    %1651 = vmatprep.subr.bf16.mxu0 0
    %1652 = vmatpush2.bf16.msra.mxu0 0
    %1653 = vmatprep.subr.bf16.mxu0 0
    %1654 = vmatpush2.bf16.msra.mxu0 0
    %1655 = vmatprep.subr.bf16.mxu0 0
    %1656 = vmatpush2.bf16.msra.mxu0 0
    %1657 = vmatprep.subr.bf16.mxu0 0
    %1658 = vmatpush2.bf16.msra.mxu0 0
    %1659 = vmatprep.mubr.bf16.mxu0 0
    %1660 = vmatmul.mubr.bf16.gmra.mxu0 %v1540
    %v1661 = vpop.f32.mrf.mxu0
    %v1662 = vadd.f32 %v1577, %v1661
    %v1663 = vpop.f32.mrf.mxu0
    %v1664 = vpop.f32.mrf.mxu0
    %v1665 = vadd.f32 %v1577, %v1664
    %v1666 = vpop.f32.mrf.mxu0
    %1667 = vmatprep.mubr.bf16.mxu0 0
    %1668 = vmatmul.mubr.bf16.gmra.mxu0 %v1541
    %v1669 = vpop.f32.mrf.mxu0
    %v1670 = vadd.f32 %v1577, %v1669
    %v1671 = vpop.f32.mrf.mxu0
    %v1672 = vpop.f32.mrf.mxu0
    %v1673 = vadd.f32 %v1577, %v1672
    %v1674 = vpop.f32.mrf.mxu0
    %1675 = vmatprep.mubr.bf16.mxu0 0
    %1676 = vmatmul.mubr.bf16.gmra.mxu0 %v1542
    %v1677 = vpop.f32.mrf.mxu0
    %v1678 = vadd.f32 %v1577, %v1677
    %v1679 = vpop.f32.mrf.mxu0
    %v1680 = vpop.f32.mrf.mxu0
    %v1681 = vadd.f32 %v1577, %v1680
    %v1682 = vpop.f32.mrf.mxu0
    %1683 = vmatprep.mubr.bf16.mxu0 0
    %1684 = vmatmul.mubr.bf16.gmra.mxu0 %v1543
    %v1685 = vpop.f32.mrf.mxu0
    %v1686 = vadd.f32 %v1577, %v1685
    %v1687 = vpop.f32.mrf.mxu0
    %v1688 = vpop.f32.mrf.mxu0
    %v1689 = vadd.f32 %v1577, %v1688
    %v1690 = vpop.f32.mrf.mxu0
    %1691 = vmatprep.mubr.bf16.mxu0 0
    %1692 = vmatmul.mubr.bf16.gmra.mxu0 %v1544
    %v1693 = vpop.f32.mrf.mxu0
    %v1694 = vadd.f32 %v1577, %v1693
    %v1695 = vpop.f32.mrf.mxu0
    %v1696 = vpop.f32.mrf.mxu0
    %v1697 = vadd.f32 %v1577, %v1696
    %v1698 = vpop.f32.mrf.mxu0
    %1699 = vmatprep.mubr.bf16.mxu0 0
    %1700 = vmatmul.mubr.bf16.gmra.mxu0 %v1545
    %v1701 = vpop.f32.mrf.mxu0
    %v1702 = vadd.f32 %v1577, %v1701
    %v1703 = vpop.f32.mrf.mxu0
    %v1704 = vpop.f32.mrf.mxu0
    %v1705 = vadd.f32 %v1577, %v1704
    %v1706 = vpop.f32.mrf.mxu0
    %1707 = vmatprep.mubr.bf16.mxu0 0
    %1708 = vmatmul.mubr.bf16.gmra.mxu0 %v1546
    %v1709 = vpop.f32.mrf.mxu0
    %v1710 = vadd.f32 %v1577, %v1709
    %v1711 = vpop.f32.mrf.mxu0
    %v1712 = vpop.f32.mrf.mxu0
    %v1713 = vadd.f32 %v1577, %v1712
    %v1714 = vpop.f32.mrf.mxu0
    %1715 = vmatprep.mubr.bf16.mxu0 0
    %1716 = vmatmul.mubr.bf16.gmra.mxu0 %v1547
    %v1717 = vpop.f32.mrf.mxu0
    %v1718 = vadd.f32 %v1577, %v1717
    %v1719 = vpop.f32.mrf.mxu0
    %v1720 = vpop.f32.mrf.mxu0
    %v1721 = vadd.f32 %v1577, %v1720
    %v1722 = vpop.f32.mrf.mxu0
    %1723 = vmatprep.mubr.bf16.mxu0 0
    %1724 = vmatmul.mubr.bf16.gmra.mxu0 %v1548
    %v1725 = vpop.f32.mrf.mxu0
    %v1726 = vadd.f32 %v1577, %v1725
    %v1727 = vpop.f32.mrf.mxu0
    %v1728 = vpop.f32.mrf.mxu0
    %v1729 = vadd.f32 %v1577, %v1728
    %v1730 = vpop.f32.mrf.mxu0
    %1731 = vmatprep.mubr.bf16.mxu0 0
    %1732 = vmatmul.mubr.bf16.gmra.mxu0 %v1549
    %v1733 = vpop.f32.mrf.mxu0
    %v1734 = vadd.f32 %v1577, %v1733
    %v1735 = vpop.f32.mrf.mxu0
    %v1736 = vpop.f32.mrf.mxu0
    %v1737 = vadd.f32 %v1577, %v1736
    %v1738 = vpop.f32.mrf.mxu0
    %1739 = vmatprep.mubr.bf16.mxu0 0
    %1740 = vmatmul.mubr.bf16.gmra.mxu0 %v1550
    %v1741 = vpop.f32.mrf.mxu0
    %v1742 = vadd.f32 %v1577, %v1741
    %v1743 = vpop.f32.mrf.mxu0
    %v1744 = vpop.f32.mrf.mxu0
    %v1745 = vadd.f32 %v1577, %v1744
    %v1746 = vpop.f32.mrf.mxu0
    %1747 = vmatprep.mubr.bf16.mxu0 0
    %1748 = vmatmul.mubr.bf16.gmra.mxu0 %v1551
    %v1749 = vpop.f32.mrf.mxu0
    %v1750 = vadd.f32 %v1577, %v1749
    %v1751 = vpop.f32.mrf.mxu0
    %v1752 = vpop.f32.mrf.mxu0
    %v1753 = vadd.f32 %v1577, %v1752
    %v1754 = vpop.f32.mrf.mxu0
    %1755 = vmatprep.mubr.bf16.mxu0 0
    %1756 = vmatmul.mubr.bf16.gmra.mxu0 %v1552
    %v1757 = vpop.f32.mrf.mxu0
    %v1758 = vadd.f32 %v1577, %v1757
    %v1759 = vpop.f32.mrf.mxu0
    %v1760 = vpop.f32.mrf.mxu0
    %v1761 = vadd.f32 %v1577, %v1760
    %v1762 = vpop.f32.mrf.mxu0
    %1763 = vmatprep.mubr.bf16.mxu0 0
    %1764 = vmatmul.mubr.bf16.gmra.mxu0 %v1553
    %v1765 = vpop.f32.mrf.mxu0
    %v1766 = vadd.f32 %v1577, %v1765
    %v1767 = vpop.f32.mrf.mxu0
    %v1768 = vpop.f32.mrf.mxu0
    %v1769 = vadd.f32 %v1577, %v1768
    %v1770 = vpop.f32.mrf.mxu0
    %1771 = vmatprep.mubr.bf16.mxu0 0
    %1772 = vmatmul.mubr.bf16.gmra.mxu0 %v1554
    %v1773 = vpop.f32.mrf.mxu0
    %v1774 = vadd.f32 %v1577, %v1773
    %v1775 = vpop.f32.mrf.mxu0
    %v1776 = vpop.f32.mrf.mxu0
    %v1777 = vadd.f32 %v1577, %v1776
    %v1778 = vpop.f32.mrf.mxu0
    %1779 = vmatprep.mubr.bf16.mxu0 0
    %1780 = vmatmul.mubr.bf16.gmra.mxu0 %v1555
    %v1781 = vpop.f32.mrf.mxu0
    %v1782 = vadd.f32 %v1577, %v1781
    %v1783 = vpop.f32.mrf.mxu0
    %v1784 = vpop.f32.mrf.mxu0
    %v1785 = vadd.f32 %v1577, %v1784
    %v1786 = vpop.f32.mrf.mxu0
    %1787 = vdwg.mxu0
    %1788 = vst [vmem:[#allocation7] sm:$0xff] %v1662
    %1789 = vst [vmem:[#allocation7 + $0x8] sm:$0xff] %v1665
    %1790 = vst [vmem:[#allocation7 + $0x10] sm:$0xff] %v1670
    %1791 = vst [vmem:[#allocation7 + $0x18] sm:$0xff] %v1673
    %1792 = vst [vmem:[#allocation7 + $0x20] sm:$0xff] %v1678
    %1793 = vst [vmem:[#allocation7 + $0x28] sm:$0xff] %v1681
    %1794 = vst [vmem:[#allocation7 + $0x30] sm:$0xff] %v1686
    %1795 = vst [vmem:[#allocation7 + $0x38] sm:$0xff] %v1689
    %1796 = vst [vmem:[#allocation7 + $0x40] sm:$0xff] %v1694
    %1797 = vst [vmem:[#allocation7 + $0x48] sm:$0xff] %v1697
    %1798 = vst [vmem:[#allocation7 + $0x50] sm:$0xff] %v1702
    %1799 = vst [vmem:[#allocation7 + $0x58] sm:$0xff] %v1705
    %1800 = vst [vmem:[#allocation7 + $0x60] sm:$0xff] %v1710
    %1801 = vst [vmem:[#allocation7 + $0x68] sm:$0xff] %v1713
    %1802 = vst [vmem:[#allocation7 + $0x70] sm:$0xff] %v1718
    %1803 = vst [vmem:[#allocation7 + $0x78] sm:$0xff] %v1721
    %1804 = vst [vmem:[#allocation7 + $0x80] sm:$0xff] %v1726
    %1805 = vst [vmem:[#allocation7 + $0x88] sm:$0xff] %v1729
    %1806 = vst [vmem:[#allocation7 + $0x90] sm:$0xff] %v1734
    %1807 = vst [vmem:[#allocation7 + $0x98] sm:$0xff] %v1737
    %1808 = vst [vmem:[#allocation7 + $0xa0] sm:$0xff] %v1742
    %1809 = vst [vmem:[#allocation7 + $0xa8] sm:$0xff] %v1745
    %1810 = vst [vmem:[#allocation7 + $0xb0] sm:$0xff] %v1750
    %1811 = vst [vmem:[#allocation7 + $0xb8] sm:$0xff] %v1753
    %1812 = vst [vmem:[#allocation7 + $0xc0] sm:$0xff] %v1758
    %1813 = vst [vmem:[#allocation7 + $0xc8] sm:$0xff] %v1761
    %1814 = vst [vmem:[#allocation7 + $0xd0] sm:$0xff] %v1766
    %1815 = vst [vmem:[#allocation7 + $0xd8] sm:$0xff] %v1769
    %1816 = vst [vmem:[#allocation7 + $0xe0] sm:$0xff] %v1774
    %1817 = vst [vmem:[#allocation7 + $0xe8] sm:$0xff] %v1777
    %1818 = vst [vmem:[#allocation7 + $0xf0] sm:$0xff] %v1782
    %1819 = vst [vmem:[#allocation7 + $0xf8] sm:$0xff] %v1785
    // Predicated region
    $region50: #{tpu_custom_call.1} parent=1 // pred_check
      _
    $region51: #{tpu_custom_call.1} parent=1 // pred_check_branch
      %1821 = sbr.rel (0) target = $region53
    $region52: #{tpu_custom_call.1} parent=1 // pred_region
      %s1823 = ssub.s32 4096, 4096
      %1824 = vsyncadd [#allocation4], %s1823
      %s1825 = sshll.u32 [#allocation7], 4
      %s1826 = int_to_ptr.vmem [resolvable:$true] %s1825
      %1831 = dma.vmem_to_hbm [thread:$0]  %s1826, 4096, %s10, [#allocation4], 128, 128, 8
    $region53: #{tpu_custom_call.1} parent=1 // pred_fallthru
      _
    // Predicated region
    $region54: #{tpu_custom_call.1} parent=1 // pred_check
      _
    $region55: #{tpu_custom_call.1} parent=1 // pred_check_branch
      %1833 = sbr.rel (0) target = $region57
    $region56: #{tpu_custom_call.1} parent=1 // pred_region
      %1834 = dma.done [#allocation4], 4096
    $region57: #{tpu_custom_call.1} parent=1 // pred_fallthru
      _
    %1835 = vsyncpa [#allocation3], 1
    %1836 = vsyncpa [#allocation6], 1
    %1837 = vsyncpa [#allocation4], 1

</llo_original>
